<compile_context>
chip_gen: v5e
topology: v5e:2x2
jax: 0.10.0
libtpu: 0.0.40
codegen_flags: <defaults>
</compile_context>

<pallas_src>
import functools

import jax
import jax.numpy as jnp
from jax.experimental import pallas as pl
from jax.experimental.pallas import tpu as pltpu


def _round_up(x: int, m: int) -> int:
    return ((x + m - 1) // m) * m


def _conv_bn_relu_kernel(x_ref, w_ref, shift_ref, o_ref, *, ksize, stride,
                         dilation, wp, tq):
    """Fused implicit-GEMM Conv+BN+ReLU for one (batch, Cout-tile) grid step.

    x_ref:     (Cin, L)        compute dtype -- zero-padded image, rows flattened on lanes
    w_ref:     (k*k, TC, Cin)  compute dtype -- BN scale already folded in, tap-major
    shift_ref: (TC, 1)         f32           -- BN shift
    o_ref:     (TC, TQ)        out dtype     -- TQ = OH * Wp (garbage cols sliced off later)
    """
    acc = jnp.zeros(o_ref.shape, jnp.float32)
    for kh in range(ksize):
        for kw in range(ksize):
            off = dilation * (kh * wp + kw)
            if stride == 1:
                tap = x_ref[:, off:off + tq]             # contiguous lane slice (VMEM)
            else:
                tap = x_ref[:, pl.ds(off, tq, stride)]   # strided lane slice
            acc += jnp.dot(w_ref[kh * ksize + kw], tap,
                           preferred_element_type=jnp.float32)
    o_ref[...] = jnp.maximum(acc + shift_ref[...], 0.0).astype(o_ref.dtype)


def _maybe_single_buffered(block_shape, index_map, single_buffered):
    """Grid-invariant blocks do not need double buffering (saves VMEM)."""
    if single_buffered:
        try:
            return pl.BlockSpec(block_shape, index_map, pipeline_mode=pl.Buffered(1))
        except Exception:  # pipeline_mode / Buffered not supported on this jax version
            pass
    return pl.BlockSpec(block_shape, index_map)


def _pick_cout_tile(cout, cin_p, kk, l_pad, tq, in_bytes, out_bytes, budget):
    """Largest Cout tile whose (layout-padded) VMEM working set fits the budget."""
    if cout <= 256:
        cands = [cout]
    else:
        cands = [c for c in (256, 128, 64, 32, 16, 8) if cout % c == 0] or [cout]
    cin_lane = _round_up(cin_p, 128)
    tq_lane = _round_up(tq, 128)
    x_bytes = 2 * cin_p * l_pad * in_bytes                    # double-buffered image block
    for tc in cands:
        tc_sub = _round_up(tc, 8)
        w_bufs = 1 if tc == cout else 2
        need = (x_bytes
                + w_bufs * kk * tc_sub * cin_lane * in_bytes  # weight block(s)
                + 2 * tc_sub * tq_lane * out_bytes            # double-buffered out block
                + tc_sub * tq_lane * 4                        # f32 accumulator
                + 2 * cin_p * tq_lane * in_bytes)             # tap-slice temporaries
        if need <= budget:
            return tc
    # TODO(synk): add a spatial-row grid axis (halo DMA) when even the smallest Cout
    # tile does not fit; fall through with the smallest tile for now.
    return cands[-1]


@functools.partial(
    jax.jit,
    static_argnames=("kernel", "stride", "padding", "dilation",
                     "compute_dtype", "out_dtype", "single_buffer_invariants"))
def _conv_bn_relu_impl(x, weight, gamma, beta, running_mean, running_var, *,
                       kernel, stride, padding, dilation, eps,
                       compute_dtype, out_dtype, single_buffer_invariants):
    n, cin, h, w = x.shape
    cout = weight.shape[0]
    k, s, p, d = kernel, stride, padding, dilation
    kk = k * k
    eff_k = d * (k - 1) + 1
    hp, wp = h + 2 * p, w + 2 * p
    oh = (hp - eff_k) // s + 1
    ow = (wp - eff_k) // s + 1
    tq = oh * wp                       # kernel output lane dim (includes garbage columns)
    out_dtype = x.dtype if out_dtype is None else out_dtype

    # Flattened zero-padded image (single fused XLA pass over x: pad + cast + reshape).
    cin_p = _round_up(cin, 8)                       # sublane-align the contraction dim
    max_off = (k - 1) * d * (wp + 1)                # largest tap offset
    l_need = max_off + s * (tq - 1) + 1             # last flat index any tap can touch, +1
    l_pad = _round_up(max(hp * wp, l_need), 128)
    xp = jnp.pad(x.astype(compute_dtype), ((0, 0), (0, cin_p - cin), (p, p), (p, p)))
    xflat = xp.reshape(n, cin_p, hp * wp)
    xflat = jnp.pad(xflat, ((0, 0), (0, 0), (0, l_pad - hp * wp)))

    # Fold inference-mode BN into the conv: scale -> weights, shift -> kernel epilogue.
    scale = gamma.astype(jnp.float32) * jax.lax.rsqrt(
        running_var.astype(jnp.float32) + eps)
    shift = (beta.astype(jnp.float32)
             - running_mean.astype(jnp.float32) * scale).reshape(cout, 1)
    w_taps = (weight.astype(jnp.float32) * scale[:, None, None, None]).astype(compute_dtype)
    w_taps = jnp.pad(w_taps, ((0, 0), (0, cin_p - cin), (0, 0), (0, 0)))
    w_taps = w_taps.transpose(2, 3, 0, 1).reshape(kk, cout, cin_p)   # tap-major: t = kh*k+kw

    in_bytes = jnp.dtype(compute_dtype).itemsize
    out_bytes = jnp.dtype(out_dtype).itemsize

    # Generation-aware VMEM sizing (v5e/v6e: 128 MiB, v7x: 64 MiB per TensorCore).
    try:
        vmem_cap = int(pltpu.get_tpu_info().vmem_capacity_bytes)
    except Exception:
        vmem_cap = 64 * 1024 * 1024
    budget = int(vmem_cap * 0.55)
    vmem_limit = int(vmem_cap * 0.75)

    tc = _pick_cout_tile(cout, cin_p, kk, l_pad, tq, in_bytes, out_bytes, budget)
    n_ct = pl.cdiv(cout, tc)
    invariant = single_buffer_invariants and n_ct == 1

    kern = functools.partial(_conv_bn_relu_kernel, ksize=k, stride=s,
                             dilation=d, wp=wp, tq=tq)
    cost = pl.CostEstimate(
        flops=2 * n * cout * cin * kk * oh * ow,
        transcendentals=0,
        bytes_accessed=(n * cin_p * l_pad * in_bytes + kk * cout * cin_p * in_bytes
                        + cout * 4 + n * cout * tq * out_bytes))

    out = pl.pallas_call(
        kern,
        out_shape=jax.ShapeDtypeStruct((n, cout, tq), out_dtype),
        grid_spec=pltpu.PrefetchScalarGridSpec(
            num_scalar_prefetch=0,
            grid=(n, n_ct),
            in_specs=[
                # Whole padded image per batch step; index map constant across the Cout
                # axis, so it is DMA'd only once per batch element.
                pl.BlockSpec((None, cin_p, l_pad), lambda b, c: (b, 0, 0)),
                _maybe_single_buffered((kk, tc, cin_p), lambda b, c: (0, c, 0), invariant),
                _maybe_single_buffered((tc, 1), lambda b, c: (c, 0), invariant),
            ],
            out_specs=pl.BlockSpec((None, tc, tq), lambda b, c: (b, c, 0)),
        ),
        compiler_params=pltpu.CompilerParams(
            dimension_semantics=("parallel", "parallel"),
            vmem_limit_bytes=vmem_limit,
        ),
        cost_estimate=cost,
    )(xflat, w_taps, shift)

    # (N, Cout, OH*Wp) -> (N, Cout, OH, Wp) -> drop garbage columns (ow >= OW).
    return out.reshape(n, cout, oh, wp)[:, :, :, :ow]


def conv_bn_relu(x, weight, gamma, beta, running_mean, running_var, *,
                 kernel, stride=1, padding=0, dilation=1, eps=1e-5,
                 compute_dtype=jnp.bfloat16, out_dtype=None):
    """ConvBnRelu forward (Conv2d -> BatchNorm2d(eval) -> ReLU). x: NCHW, weight: OIHW."""
    kwargs = dict(kernel=kernel, stride=stride, padding=padding, dilation=dilation,
                  eps=eps, compute_dtype=compute_dtype, out_dtype=out_dtype)
    try:
        return _conv_bn_relu_impl(x, weight, gamma, beta, running_mean, running_var,
                                  single_buffer_invariants=True, **kwargs)
    except Exception:
        # pl.Buffered(1) (single-buffered invariant operands) rejected by this
        # jax/Mosaic version -- retry with default double buffering.
        return _conv_bn_relu_impl(x, weight, gamma, beta, running_mean, running_var,
                                  single_buffer_invariants=False, **kwargs)


def _reference(x, weight, gamma, beta, running_mean, running_var,
               kernel, stride, padding, dilation, eps=1e-5,
               compute_dtype=jnp.bfloat16):
    scale = gamma / jnp.sqrt(running_var + eps)
    shift = beta - running_mean * scale
    w_folded = (weight * scale[:, None, None, None]).astype(compute_dtype)
    y = jax.lax.conv_general_dilated(
        x.astype(compute_dtype), w_folded,
        window_strides=(stride, stride),
        padding=[(padding, padding), (padding, padding)],
        rhs_dilation=(dilation, dilation),
        dimension_numbers=("NCHW", "OIHW", "NCHW"),
        preferred_element_type=jnp.float32)
    y = y + shift[None, :, None, None]
    return jnp.maximum(y, 0.0).astype(x.dtype)


if __name__ == "__main__":
    # ConvBnRelu(input_channel=4, output_channel=8, kernel=3, padding=1)
    N, CIN, COUT, K, H, W = 2, 4, 8, 3, 16, 16
    STRIDE, PAD, DIL = 1, 1, 1

    key = jax.random.PRNGKey(0)
    kx, kwt, kg, kb, km, kv = jax.random.split(key, 6)
    x = jax.random.normal(kx, (N, CIN, H, W), dtype=jnp.float32)
    weight = jax.random.normal(kwt, (COUT, CIN, K, K), dtype=jnp.float32) * 0.1
    gamma = 1.0 + 0.1 * jax.random.normal(kg, (COUT,), dtype=jnp.float32)
    beta = 0.1 * jax.random.normal(kb, (COUT,), dtype=jnp.float32)
    running_mean = 0.1 * jax.random.normal(km, (COUT,), dtype=jnp.float32)
    running_var = jnp.abs(1.0 + 0.1 * jax.random.normal(kv, (COUT,), dtype=jnp.float32))

    out = conv_bn_relu(x, weight, gamma, beta, running_mean, running_var,
                       kernel=K, stride=STRIDE, padding=PAD, dilation=DIL)
    out = jax.block_until_ready(out)

    ref = _reference(x, weight, gamma, beta, running_mean, running_var,
                     K, STRIDE, PAD, DIL)
    assert out.shape == (N, COUT, H, W), out.shape
    assert jnp.allclose(out, ref, atol=2e-2, rtol=2e-2), "mismatch vs reference"
    print("KERNEL_OK")
</pallas_src>

<mosaic_0001>
module attributes {stable_mosaic.version = 11 : i64} {
  func.func @_conv_bn_relu_kernel(%arg0: i32, %arg1: i32, %arg2: memref<1x8x384xbf16, #tpu.memory_space<vmem>>, %arg3: memref<9x8x8xbf16, #tpu.memory_space<vmem>>, %arg4: memref<8x1xf32, #tpu.memory_space<vmem>>, %arg5: memref<1x8x288xf32, #tpu.memory_space<vmem>>) attributes {dimension_semantics = [#tpu.dimension_semantics<parallel>, #tpu.dimension_semantics<parallel>], iteration_bounds = array<i64: 2, 1>, scalar_prefetch = 0 : i64, scratch_operands = 0 : i64, tpu.core_type = #tpu.core_type<tc>, window_params = [{transform_indices = @transform_0, window_bounds = array<i64: 1, 8, 384>}, {pipeline_mode = #tpu.pipeline_mode<synchronous>, transform_indices = @transform_1, window_bounds = array<i64: 9, 8, 8>}, {pipeline_mode = #tpu.pipeline_mode<synchronous>, transform_indices = @transform_2, window_bounds = array<i64: 8, 1>}, {transform_indices = @transform_3, window_bounds = array<i64: 1, 8, 288>}]} {
    %cst = arith.constant 0.000000e+00 : f32
    %0 = vector.broadcast %cst : f32 to vector<8x288xf32>
    %c0 = arith.constant 0 : index
    %c0_0 = arith.constant 0 : index
    %c0_1 = arith.constant 0 : index
    %1 = vector.load %arg2[%c0, %c0_0, %c0_1] : memref<1x8x384xbf16, #tpu.memory_space<vmem>>, vector<1x8x288xbf16>
    %2 = vector.shape_cast %1 : vector<1x8x288xbf16> to vector<8x288xbf16>
    %c0_2 = arith.constant 0 : index
    %c0_3 = arith.constant 0 : index
    %c0_4 = arith.constant 0 : index
    %3 = vector.load %arg3[%c0_2, %c0_3, %c0_4] : memref<9x8x8xbf16, #tpu.memory_space<vmem>>, vector<1x8x8xbf16>
    %4 = vector.shape_cast %3 : vector<1x8x8xbf16> to vector<8x8xbf16>
    %cst_5 = arith.constant dense<0.000000e+00> : vector<8x288xf32>
    %5 = tpu.matmul %4, %2, %cst_5 {dimension_numbers = #tpu.dot_dimension_numbers<[1], [0], [0], [1], [0, 0, 1, 1], [], []>} : vector<8x8xbf16>, vector<8x288xbf16>, vector<8x288xf32> -> vector<8x288xf32>
    %6 = arith.addf %0, %5 : vector<8x288xf32>
    %c0_6 = arith.constant 0 : index
    %c0_7 = arith.constant 0 : index
    %c1 = arith.constant 1 : index
    %7 = vector.load %arg2[%c0_6, %c0_7, %c1] : memref<1x8x384xbf16, #tpu.memory_space<vmem>>, vector<1x8x288xbf16>
    %8 = vector.shape_cast %7 : vector<1x8x288xbf16> to vector<8x288xbf16>
    %c1_8 = arith.constant 1 : index
    %c0_9 = arith.constant 0 : index
    %c0_10 = arith.constant 0 : index
    %9 = vector.load %arg3[%c1_8, %c0_9, %c0_10] : memref<9x8x8xbf16, #tpu.memory_space<vmem>>, vector<1x8x8xbf16>
    %10 = vector.shape_cast %9 : vector<1x8x8xbf16> to vector<8x8xbf16>
    %cst_11 = arith.constant dense<0.000000e+00> : vector<8x288xf32>
    %11 = tpu.matmul %10, %8, %cst_11 {dimension_numbers = #tpu.dot_dimension_numbers<[1], [0], [0], [1], [0, 0, 1, 1], [], []>} : vector<8x8xbf16>, vector<8x288xbf16>, vector<8x288xf32> -> vector<8x288xf32>
    %12 = arith.addf %6, %11 : vector<8x288xf32>
    %c0_12 = arith.constant 0 : index
    %c0_13 = arith.constant 0 : index
    %c2 = arith.constant 2 : index
    %13 = vector.load %arg2[%c0_12, %c0_13, %c2] : memref<1x8x384xbf16, #tpu.memory_space<vmem>>, vector<1x8x288xbf16>
    %14 = vector.shape_cast %13 : vector<1x8x288xbf16> to vector<8x288xbf16>
    %c2_14 = arith.constant 2 : index
    %c0_15 = arith.constant 0 : index
    %c0_16 = arith.constant 0 : index
    %15 = vector.load %arg3[%c2_14, %c0_15, %c0_16] : memref<9x8x8xbf16, #tpu.memory_space<vmem>>, vector<1x8x8xbf16>
    %16 = vector.shape_cast %15 : vector<1x8x8xbf16> to vector<8x8xbf16>
    %cst_17 = arith.constant dense<0.000000e+00> : vector<8x288xf32>
    %17 = tpu.matmul %16, %14, %cst_17 {dimension_numbers = #tpu.dot_dimension_numbers<[1], [0], [0], [1], [0, 0, 1, 1], [], []>} : vector<8x8xbf16>, vector<8x288xbf16>, vector<8x288xf32> -> vector<8x288xf32>
    %18 = arith.addf %12, %17 : vector<8x288xf32>
    %c0_18 = arith.constant 0 : index
    %c0_19 = arith.constant 0 : index
    %c18 = arith.constant 18 : index
    %19 = vector.load %arg2[%c0_18, %c0_19, %c18] : memref<1x8x384xbf16, #tpu.memory_space<vmem>>, vector<1x8x288xbf16>
    %20 = vector.shape_cast %19 : vector<1x8x288xbf16> to vector<8x288xbf16>
    %c3 = arith.constant 3 : index
    %c0_20 = arith.constant 0 : index
    %c0_21 = arith.constant 0 : index
    %21 = vector.load %arg3[%c3, %c0_20, %c0_21] : memref<9x8x8xbf16, #tpu.memory_space<vmem>>, vector<1x8x8xbf16>
    %22 = vector.shape_cast %21 : vector<1x8x8xbf16> to vector<8x8xbf16>
    %cst_22 = arith.constant dense<0.000000e+00> : vector<8x288xf32>
    %23 = tpu.matmul %22, %20, %cst_22 {dimension_numbers = #tpu.dot_dimension_numbers<[1], [0], [0], [1], [0, 0, 1, 1], [], []>} : vector<8x8xbf16>, vector<8x288xbf16>, vector<8x288xf32> -> vector<8x288xf32>
    %24 = arith.addf %18, %23 : vector<8x288xf32>
    %c0_23 = arith.constant 0 : index
    %c0_24 = arith.constant 0 : index
    %c19 = arith.constant 19 : index
    %25 = vector.load %arg2[%c0_23, %c0_24, %c19] : memref<1x8x384xbf16, #tpu.memory_space<vmem>>, vector<1x8x288xbf16>
    %26 = vector.shape_cast %25 : vector<1x8x288xbf16> to vector<8x288xbf16>
    %c4 = arith.constant 4 : index
    %c0_25 = arith.constant 0 : index
    %c0_26 = arith.constant 0 : index
    %27 = vector.load %arg3[%c4, %c0_25, %c0_26] : memref<9x8x8xbf16, #tpu.memory_space<vmem>>, vector<1x8x8xbf16>
    %28 = vector.shape_cast %27 : vector<1x8x8xbf16> to vector<8x8xbf16>
    %cst_27 = arith.constant dense<0.000000e+00> : vector<8x288xf32>
    %29 = tpu.matmul %28, %26, %cst_27 {dimension_numbers = #tpu.dot_dimension_numbers<[1], [0], [0], [1], [0, 0, 1, 1], [], []>} : vector<8x8xbf16>, vector<8x288xbf16>, vector<8x288xf32> -> vector<8x288xf32>
    %30 = arith.addf %24, %29 : vector<8x288xf32>
    %c0_28 = arith.constant 0 : index
    %c0_29 = arith.constant 0 : index
    %c20 = arith.constant 20 : index
    %31 = vector.load %arg2[%c0_28, %c0_29, %c20] : memref<1x8x384xbf16, #tpu.memory_space<vmem>>, vector<1x8x288xbf16>
    %32 = vector.shape_cast %31 : vector<1x8x288xbf16> to vector<8x288xbf16>
    %c5 = arith.constant 5 : index
    %c0_30 = arith.constant 0 : index
    %c0_31 = arith.constant 0 : index
    %33 = vector.load %arg3[%c5, %c0_30, %c0_31] : memref<9x8x8xbf16, #tpu.memory_space<vmem>>, vector<1x8x8xbf16>
    %34 = vector.shape_cast %33 : vector<1x8x8xbf16> to vector<8x8xbf16>
    %cst_32 = arith.constant dense<0.000000e+00> : vector<8x288xf32>
    %35 = tpu.matmul %34, %32, %cst_32 {dimension_numbers = #tpu.dot_dimension_numbers<[1], [0], [0], [1], [0, 0, 1, 1], [], []>} : vector<8x8xbf16>, vector<8x288xbf16>, vector<8x288xf32> -> vector<8x288xf32>
    %36 = arith.addf %30, %35 : vector<8x288xf32>
    %c0_33 = arith.constant 0 : index
    %c0_34 = arith.constant 0 : index
    %c36 = arith.constant 36 : index
    %37 = vector.load %arg2[%c0_33, %c0_34, %c36] : memref<1x8x384xbf16, #tpu.memory_space<vmem>>, vector<1x8x288xbf16>
    %38 = vector.shape_cast %37 : vector<1x8x288xbf16> to vector<8x288xbf16>
    %c6 = arith.constant 6 : index
    %c0_35 = arith.constant 0 : index
    %c0_36 = arith.constant 0 : index
    %39 = vector.load %arg3[%c6, %c0_35, %c0_36] : memref<9x8x8xbf16, #tpu.memory_space<vmem>>, vector<1x8x8xbf16>
    %40 = vector.shape_cast %39 : vector<1x8x8xbf16> to vector<8x8xbf16>
    %cst_37 = arith.constant dense<0.000000e+00> : vector<8x288xf32>
    %41 = tpu.matmul %40, %38, %cst_37 {dimension_numbers = #tpu.dot_dimension_numbers<[1], [0], [0], [1], [0, 0, 1, 1], [], []>} : vector<8x8xbf16>, vector<8x288xbf16>, vector<8x288xf32> -> vector<8x288xf32>
    %42 = arith.addf %36, %41 : vector<8x288xf32>
    %c0_38 = arith.constant 0 : index
    %c0_39 = arith.constant 0 : index
    %c37 = arith.constant 37 : index
    %43 = vector.load %arg2[%c0_38, %c0_39, %c37] : memref<1x8x384xbf16, #tpu.memory_space<vmem>>, vector<1x8x288xbf16>
    %44 = vector.shape_cast %43 : vector<1x8x288xbf16> to vector<8x288xbf16>
    %c7 = arith.constant 7 : index
    %c0_40 = arith.constant 0 : index
    %c0_41 = arith.constant 0 : index
    %45 = vector.load %arg3[%c7, %c0_40, %c0_41] : memref<9x8x8xbf16, #tpu.memory_space<vmem>>, vector<1x8x8xbf16>
    %46 = vector.shape_cast %45 : vector<1x8x8xbf16> to vector<8x8xbf16>
    %cst_42 = arith.constant dense<0.000000e+00> : vector<8x288xf32>
    %47 = tpu.matmul %46, %44, %cst_42 {dimension_numbers = #tpu.dot_dimension_numbers<[1], [0], [0], [1], [0, 0, 1, 1], [], []>} : vector<8x8xbf16>, vector<8x288xbf16>, vector<8x288xf32> -> vector<8x288xf32>
    %48 = arith.addf %42, %47 : vector<8x288xf32>
    %c0_43 = arith.constant 0 : index
    %c0_44 = arith.constant 0 : index
    %c38 = arith.constant 38 : index
    %49 = vector.load %arg2[%c0_43, %c0_44, %c38] : memref<1x8x384xbf16, #tpu.memory_space<vmem>>, vector<1x8x288xbf16>
    %50 = vector.shape_cast %49 : vector<1x8x288xbf16> to vector<8x288xbf16>
    %c8 = arith.constant 8 : index
    %c0_45 = arith.constant 0 : index
    %c0_46 = arith.constant 0 : index
    %51 = vector.load %arg3[%c8, %c0_45, %c0_46] : memref<9x8x8xbf16, #tpu.memory_space<vmem>>, vector<1x8x8xbf16>
    %52 = vector.shape_cast %51 : vector<1x8x8xbf16> to vector<8x8xbf16>
    %cst_47 = arith.constant dense<0.000000e+00> : vector<8x288xf32>
    %53 = tpu.matmul %52, %50, %cst_47 {dimension_numbers = #tpu.dot_dimension_numbers<[1], [0], [0], [1], [0, 0, 1, 1], [], []>} : vector<8x8xbf16>, vector<8x288xbf16>, vector<8x288xf32> -> vector<8x288xf32>
    %54 = arith.addf %48, %53 : vector<8x288xf32>
    %c0_48 = arith.constant 0 : index
    %c0_49 = arith.constant 0 : index
    %55 = vector.load %arg4[%c0_48, %c0_49] : memref<8x1xf32, #tpu.memory_space<vmem>>, vector<8x1xf32>
    %56 = vector.broadcast %55 : vector<8x1xf32> to vector<8x288xf32>
    %57 = arith.addf %54, %56 : vector<8x288xf32>
    %cst_50 = arith.constant 0.000000e+00 : f32
    %58 = vector.broadcast %cst_50 : f32 to vector<8x288xf32>
    %59 = arith.maximumf %57, %58 : vector<8x288xf32>
    %c0_51 = arith.constant 0 : index
    %c0_52 = arith.constant 0 : index
    %c0_53 = arith.constant 0 : index
    %60 = vector.load %arg5[%c0_51, %c0_52, %c0_53] : memref<1x8x288xf32, #tpu.memory_space<vmem>>, vector<1x8x288xf32>
    %61 = vector.shape_cast %60 : vector<1x8x288xf32> to vector<8x288xf32>
    %62 = vector.shape_cast %59 : vector<8x288xf32> to vector<1x8x288xf32>
    tpu.vector_store %arg5[%c0_51, %c0_52, %c0_53], %62 {strides = array<i32>} : memref<1x8x288xf32, #tpu.memory_space<vmem>>, vector<1x8x288xf32>,
    return
  }
  func.func @transform_0(%arg0: i32, %arg1: i32) -> (i32, i32, i32) {
    %c0_i32 = arith.constant 0 : i32
    %c0_i32_0 = arith.constant 0 : i32
    %c0_i32_1 = arith.constant 0 : i32
    return %arg0, %c0_i32, %c0_i32_0 : i32, i32, i32
  }
  func.func @transform_1(%arg0: i32, %arg1: i32) -> (i32, i32, i32) {
    %c0_i32 = arith.constant 0 : i32
    %c0_i32_0 = arith.constant 0 : i32
    %c0_i32_1 = arith.constant 0 : i32
    return %c0_i32, %arg1, %c0_i32_0 : i32, i32, i32
  }
  func.func @transform_2(%arg0: i32, %arg1: i32) -> (i32, i32) {
    %c0_i32 = arith.constant 0 : i32
    %c0_i32_0 = arith.constant 0 : i32
    return %arg1, %c0_i32 : i32, i32
  }
  func.func @transform_3(%arg0: i32, %arg1: i32) -> (i32, i32, i32) {
    %c0_i32 = arith.constant 0 : i32
    %c0_i32_0 = arith.constant 0 : i32
    return %arg0, %arg1, %c0_i32 : i32, i32, i32
  }
}

module attributes {stable_mosaic.version = 11 : i64} {
  func.func @_conv_bn_relu_kernel(%arg0: i32, %arg1: i32, %arg2: memref<1x8x384xbf16, #tpu.memory_space<vmem>>, %arg3: memref<9x8x8xbf16, #tpu.memory_space<vmem>>, %arg4: memref<8x1xf32, #tpu.memory_space<vmem>>, %arg5: memref<1x8x288xf32, #tpu.memory_space<vmem>>) attributes {dimension_semantics = [#tpu.dimension_semantics<parallel>, #tpu.dimension_semantics<parallel>], iteration_bounds = array<i64: 2, 1>, scalar_prefetch = 0 : i64, scratch_operands = 0 : i64, tpu.core_type = #tpu.core_type<tc>, window_params = [{transform_indices = @transform_0, window_bounds = array<i64: 1, 8, 384>}, {transform_indices = @transform_1, window_bounds = array<i64: 9, 8, 8>}, {transform_indices = @transform_2, window_bounds = array<i64: 8, 1>}, {transform_indices = @transform_3, window_bounds = array<i64: 1, 8, 288>}]} {
    %cst = arith.constant 0.000000e+00 : f32
    %0 = vector.broadcast %cst : f32 to vector<8x288xf32>
    %c0 = arith.constant 0 : index
    %c0_0 = arith.constant 0 : index
    %c0_1 = arith.constant 0 : index
    %1 = vector.load %arg2[%c0, %c0_0, %c0_1] : memref<1x8x384xbf16, #tpu.memory_space<vmem>>, vector<1x8x288xbf16>
    %2 = vector.shape_cast %1 : vector<1x8x288xbf16> to vector<8x288xbf16>
    %c0_2 = arith.constant 0 : index
    %c0_3 = arith.constant 0 : index
    %c0_4 = arith.constant 0 : index
    %3 = vector.load %arg3[%c0_2, %c0_3, %c0_4] : memref<9x8x8xbf16, #tpu.memory_space<vmem>>, vector<1x8x8xbf16>
    %4 = vector.shape_cast %3 : vector<1x8x8xbf16> to vector<8x8xbf16>
    %cst_5 = arith.constant dense<0.000000e+00> : vector<8x288xf32>
    %5 = tpu.matmul %4, %2, %cst_5 {dimension_numbers = #tpu.dot_dimension_numbers<[1], [0], [0], [1], [0, 0, 1, 1], [], []>} : vector<8x8xbf16>, vector<8x288xbf16>, vector<8x288xf32> -> vector<8x288xf32>
    %6 = arith.addf %0, %5 : vector<8x288xf32>
    %c0_6 = arith.constant 0 : index
    %c0_7 = arith.constant 0 : index
    %c1 = arith.constant 1 : index
    %7 = vector.load %arg2[%c0_6, %c0_7, %c1] : memref<1x8x384xbf16, #tpu.memory_space<vmem>>, vector<1x8x288xbf16>
    %8 = vector.shape_cast %7 : vector<1x8x288xbf16> to vector<8x288xbf16>
    %c1_8 = arith.constant 1 : index
    %c0_9 = arith.constant 0 : index
    %c0_10 = arith.constant 0 : index
    %9 = vector.load %arg3[%c1_8, %c0_9, %c0_10] : memref<9x8x8xbf16, #tpu.memory_space<vmem>>, vector<1x8x8xbf16>
    %10 = vector.shape_cast %9 : vector<1x8x8xbf16> to vector<8x8xbf16>
    %cst_11 = arith.constant dense<0.000000e+00> : vector<8x288xf32>
    %11 = tpu.matmul %10, %8, %cst_11 {dimension_numbers = #tpu.dot_dimension_numbers<[1], [0], [0], [1], [0, 0, 1, 1], [], []>} : vector<8x8xbf16>, vector<8x288xbf16>, vector<8x288xf32> -> vector<8x288xf32>
    %12 = arith.addf %6, %11 : vector<8x288xf32>
    %c0_12 = arith.constant 0 : index
    %c0_13 = arith.constant 0 : index
    %c2 = arith.constant 2 : index
    %13 = vector.load %arg2[%c0_12, %c0_13, %c2] : memref<1x8x384xbf16, #tpu.memory_space<vmem>>, vector<1x8x288xbf16>
    %14 = vector.shape_cast %13 : vector<1x8x288xbf16> to vector<8x288xbf16>
    %c2_14 = arith.constant 2 : index
    %c0_15 = arith.constant 0 : index
    %c0_16 = arith.constant 0 : index
    %15 = vector.load %arg3[%c2_14, %c0_15, %c0_16] : memref<9x8x8xbf16, #tpu.memory_space<vmem>>, vector<1x8x8xbf16>
    %16 = vector.shape_cast %15 : vector<1x8x8xbf16> to vector<8x8xbf16>
    %cst_17 = arith.constant dense<0.000000e+00> : vector<8x288xf32>
    %17 = tpu.matmul %16, %14, %cst_17 {dimension_numbers = #tpu.dot_dimension_numbers<[1], [0], [0], [1], [0, 0, 1, 1], [], []>} : vector<8x8xbf16>, vector<8x288xbf16>, vector<8x288xf32> -> vector<8x288xf32>
    %18 = arith.addf %12, %17 : vector<8x288xf32>
    %c0_18 = arith.constant 0 : index
    %c0_19 = arith.constant 0 : index
    %c18 = arith.constant 18 : index
    %19 = vector.load %arg2[%c0_18, %c0_19, %c18] : memref<1x8x384xbf16, #tpu.memory_space<vmem>>, vector<1x8x288xbf16>
    %20 = vector.shape_cast %19 : vector<1x8x288xbf16> to vector<8x288xbf16>
    %c3 = arith.constant 3 : index
    %c0_20 = arith.constant 0 : index
    %c0_21 = arith.constant 0 : index
    %21 = vector.load %arg3[%c3, %c0_20, %c0_21] : memref<9x8x8xbf16, #tpu.memory_space<vmem>>, vector<1x8x8xbf16>
    %22 = vector.shape_cast %21 : vector<1x8x8xbf16> to vector<8x8xbf16>
    %cst_22 = arith.constant dense<0.000000e+00> : vector<8x288xf32>
    %23 = tpu.matmul %22, %20, %cst_22 {dimension_numbers = #tpu.dot_dimension_numbers<[1], [0], [0], [1], [0, 0, 1, 1], [], []>} : vector<8x8xbf16>, vector<8x288xbf16>, vector<8x288xf32> -> vector<8x288xf32>
    %24 = arith.addf %18, %23 : vector<8x288xf32>
    %c0_23 = arith.constant 0 : index
    %c0_24 = arith.constant 0 : index
    %c19 = arith.constant 19 : index
    %25 = vector.load %arg2[%c0_23, %c0_24, %c19] : memref<1x8x384xbf16, #tpu.memory_space<vmem>>, vector<1x8x288xbf16>
    %26 = vector.shape_cast %25 : vector<1x8x288xbf16> to vector<8x288xbf16>
    %c4 = arith.constant 4 : index
    %c0_25 = arith.constant 0 : index
    %c0_26 = arith.constant 0 : index
    %27 = vector.load %arg3[%c4, %c0_25, %c0_26] : memref<9x8x8xbf16, #tpu.memory_space<vmem>>, vector<1x8x8xbf16>
    %28 = vector.shape_cast %27 : vector<1x8x8xbf16> to vector<8x8xbf16>
    %cst_27 = arith.constant dense<0.000000e+00> : vector<8x288xf32>
    %29 = tpu.matmul %28, %26, %cst_27 {dimension_numbers = #tpu.dot_dimension_numbers<[1], [0], [0], [1], [0, 0, 1, 1], [], []>} : vector<8x8xbf16>, vector<8x288xbf16>, vector<8x288xf32> -> vector<8x288xf32>
    %30 = arith.addf %24, %29 : vector<8x288xf32>
    %c0_28 = arith.constant 0 : index
    %c0_29 = arith.constant 0 : index
    %c20 = arith.constant 20 : index
    %31 = vector.load %arg2[%c0_28, %c0_29, %c20] : memref<1x8x384xbf16, #tpu.memory_space<vmem>>, vector<1x8x288xbf16>
    %32 = vector.shape_cast %31 : vector<1x8x288xbf16> to vector<8x288xbf16>
    %c5 = arith.constant 5 : index
    %c0_30 = arith.constant 0 : index
    %c0_31 = arith.constant 0 : index
    %33 = vector.load %arg3[%c5, %c0_30, %c0_31] : memref<9x8x8xbf16, #tpu.memory_space<vmem>>, vector<1x8x8xbf16>
    %34 = vector.shape_cast %33 : vector<1x8x8xbf16> to vector<8x8xbf16>
    %cst_32 = arith.constant dense<0.000000e+00> : vector<8x288xf32>
    %35 = tpu.matmul %34, %32, %cst_32 {dimension_numbers = #tpu.dot_dimension_numbers<[1], [0], [0], [1], [0, 0, 1, 1], [], []>} : vector<8x8xbf16>, vector<8x288xbf16>, vector<8x288xf32> -> vector<8x288xf32>
    %36 = arith.addf %30, %35 : vector<8x288xf32>
    %c0_33 = arith.constant 0 : index
    %c0_34 = arith.constant 0 : index
    %c36 = arith.constant 36 : index
    %37 = vector.load %arg2[%c0_33, %c0_34, %c36] : memref<1x8x384xbf16, #tpu.memory_space<vmem>>, vector<1x8x288xbf16>
    %38 = vector.shape_cast %37 : vector<1x8x288xbf16> to vector<8x288xbf16>
    %c6 = arith.constant 6 : index
    %c0_35 = arith.constant 0 : index
    %c0_36 = arith.constant 0 : index
    %39 = vector.load %arg3[%c6, %c0_35, %c0_36] : memref<9x8x8xbf16, #tpu.memory_space<vmem>>, vector<1x8x8xbf16>
    %40 = vector.shape_cast %39 : vector<1x8x8xbf16> to vector<8x8xbf16>
    %cst_37 = arith.constant dense<0.000000e+00> : vector<8x288xf32>
    %41 = tpu.matmul %40, %38, %cst_37 {dimension_numbers = #tpu.dot_dimension_numbers<[1], [0], [0], [1], [0, 0, 1, 1], [], []>} : vector<8x8xbf16>, vector<8x288xbf16>, vector<8x288xf32> -> vector<8x288xf32>
    %42 = arith.addf %36, %41 : vector<8x288xf32>
    %c0_38 = arith.constant 0 : index
    %c0_39 = arith.constant 0 : index
    %c37 = arith.constant 37 : index
    %43 = vector.load %arg2[%c0_38, %c0_39, %c37] : memref<1x8x384xbf16, #tpu.memory_space<vmem>>, vector<1x8x288xbf16>
    %44 = vector.shape_cast %43 : vector<1x8x288xbf16> to vector<8x288xbf16>
    %c7 = arith.constant 7 : index
    %c0_40 = arith.constant 0 : index
    %c0_41 = arith.constant 0 : index
    %45 = vector.load %arg3[%c7, %c0_40, %c0_41] : memref<9x8x8xbf16, #tpu.memory_space<vmem>>, vector<1x8x8xbf16>
    %46 = vector.shape_cast %45 : vector<1x8x8xbf16> to vector<8x8xbf16>
    %cst_42 = arith.constant dense<0.000000e+00> : vector<8x288xf32>
    %47 = tpu.matmul %46, %44, %cst_42 {dimension_numbers = #tpu.dot_dimension_numbers<[1], [0], [0], [1], [0, 0, 1, 1], [], []>} : vector<8x8xbf16>, vector<8x288xbf16>, vector<8x288xf32> -> vector<8x288xf32>
    %48 = arith.addf %42, %47 : vector<8x288xf32>
    %c0_43 = arith.constant 0 : index
    %c0_44 = arith.constant 0 : index
    %c38 = arith.constant 38 : index
    %49 = vector.load %arg2[%c0_43, %c0_44, %c38] : memref<1x8x384xbf16, #tpu.memory_space<vmem>>, vector<1x8x288xbf16>
    %50 = vector.shape_cast %49 : vector<1x8x288xbf16> to vector<8x288xbf16>
    %c8 = arith.constant 8 : index
    %c0_45 = arith.constant 0 : index
    %c0_46 = arith.constant 0 : index
    %51 = vector.load %arg3[%c8, %c0_45, %c0_46] : memref<9x8x8xbf16, #tpu.memory_space<vmem>>, vector<1x8x8xbf16>
    %52 = vector.shape_cast %51 : vector<1x8x8xbf16> to vector<8x8xbf16>
    %cst_47 = arith.constant dense<0.000000e+00> : vector<8x288xf32>
    %53 = tpu.matmul %52, %50, %cst_47 {dimension_numbers = #tpu.dot_dimension_numbers<[1], [0], [0], [1], [0, 0, 1, 1], [], []>} : vector<8x8xbf16>, vector<8x288xbf16>, vector<8x288xf32> -> vector<8x288xf32>
    %54 = arith.addf %48, %53 : vector<8x288xf32>
    %c0_48 = arith.constant 0 : index
    %c0_49 = arith.constant 0 : index
    %55 = vector.load %arg4[%c0_48, %c0_49] : memref<8x1xf32, #tpu.memory_space<vmem>>, vector<8x1xf32>
    %56 = vector.broadcast %55 : vector<8x1xf32> to vector<8x288xf32>
    %57 = arith.addf %54, %56 : vector<8x288xf32>
    %cst_50 = arith.constant 0.000000e+00 : f32
    %58 = vector.broadcast %cst_50 : f32 to vector<8x288xf32>
    %59 = arith.maximumf %57, %58 : vector<8x288xf32>
    %c0_51 = arith.constant 0 : index
    %c0_52 = arith.constant 0 : index
    %c0_53 = arith.constant 0 : index
    %60 = vector.load %arg5[%c0_51, %c0_52, %c0_53] : memref<1x8x288xf32, #tpu.memory_space<vmem>>, vector<1x8x288xf32>
    %61 = vector.shape_cast %60 : vector<1x8x288xf32> to vector<8x288xf32>
    %62 = vector.shape_cast %59 : vector<8x288xf32> to vector<1x8x288xf32>
    tpu.vector_store %arg5[%c0_51, %c0_52, %c0_53], %62 {strides = array<i32>} : memref<1x8x288xf32, #tpu.memory_space<vmem>>, vector<1x8x288xf32>,
    return
  }
  func.func @transform_0(%arg0: i32, %arg1: i32) -> (i32, i32, i32) {
    %c0_i32 = arith.constant 0 : i32
    %c0_i32_0 = arith.constant 0 : i32
    %c0_i32_1 = arith.constant 0 : i32
    return %arg0, %c0_i32, %c0_i32_0 : i32, i32, i32
  }
  func.func @transform_1(%arg0: i32, %arg1: i32) -> (i32, i32, i32) {
    %c0_i32 = arith.constant 0 : i32
    %c0_i32_0 = arith.constant 0 : i32
    %c0_i32_1 = arith.constant 0 : i32
    return %c0_i32, %arg1, %c0_i32_0 : i32, i32, i32
  }
  func.func @transform_2(%arg0: i32, %arg1: i32) -> (i32, i32) {
    %c0_i32 = arith.constant 0 : i32
    %c0_i32_0 = arith.constant 0 : i32
    return %arg1, %c0_i32 : i32, i32
  }
  func.func @transform_3(%arg0: i32, %arg1: i32) -> (i32, i32, i32) {
    %c0_i32 = arith.constant 0 : i32
    %c0_i32_0 = arith.constant 0 : i32
    return %arg0, %arg1, %c0_i32 : i32, i32, i32
  }
}

</mosaic_0001>

<llo_original>
// kernel: _conv_bn_relu_impl.1
$region0: #{_conv_bn_relu_impl.1}
  #allocation0 [shape = 'u32[]', space=smem, size = 0x4, offset = 0x4, fixed_abs, tag = 'smem constant byte address 0x4 - core index']
  #allocation1 [shape = 'u32[72,128]{1,0:T(1,128)}', space=vmem, size = 0x9000, scoped, tag = 'internal scratch']
  %s0 = inlined_call_operand.vmem [shape: bf16[2,8,384], index: 0, kind: input, shape index: {}]
  %s1 = inlined_call_operand.vmem [shape: bf16[9,8,8], index: 1, kind: input, shape index: {}]
  %s2 = inlined_call_operand.vmem [shape: f32[8,1], index: 2, kind: input, shape index: {}]
  %s3 = inlined_call_operand.vmem [shape: f32[2,8,288], index: 3, kind: output, shape index: {}]
  %s4 = sld [smem:[#allocation0]]
  $region45: #{_conv_bn_relu_impl.1} parent=0
    _
  %s6 = ssub.s32 1, %s4
  %s7 = scalar_select 0, %s6, %s4
  loop: start=0, step=1, limit=4
  $region2: #{_conv_bn_relu_impl.1} parent=0 // loop_pre_header
    _
  $region3: #{_conv_bn_relu_impl.1} parent=0 // loop_header
    %s9 = sphi 0, %s13
    %p10 = scmp.ge.s32.totalorder %s9, 4
    %s16 = sphi 0, %s28
    %s17 = sphi 0, %s24
    %s18 = sphi 0, %s16
    %s19 = sphi 0, %s17
    %s20 = sphi 0, %s18
    %s21 = sphi 0, %s19
    %s31 = sphi 0, %s33
    %s34 = sphi 0, %s31
    %s35 = sphi 0, %s34
    %s51 = sphi 0, %s35
    %s57 = sphi 0, %s59
    %s60 = sphi 0, %s57
    %s61 = sphi 0, %s60
    %s77 = sphi 0, %s61
    %s83 = sphi 0, %s85
    %s86 = sphi 0, %s83
    %s87 = sphi 0, %s86
    %s103 = sphi 0, %s87
    %s111 = sphi 0, %s113
    %s114 = sphi 0, %s111
    %s115 = sphi 0, %s114
    %s131 = sphi 0, %s115
  $region4: #{_conv_bn_relu_impl.1} parent=0 // loop_header_branch
    %12 = sbr.rel (%p10) target = $region8
  $region5: #{_conv_bn_relu_impl.1} parent=0 // loop_body
    %s14 = ssub.s32 %s9, 1
    %s15 = ssub.s32 %s9, 2
    %s22 = sadd.s32 1, %s17
    %p23 = scmp.ge.s32.totalorder %s22, 1
    %s24 = scalar_select %p23, 0, %s22
    %s25 = sadd.s32 1, %s16
    %s26 = scalar_select %p23, %s25, %s16
    %p27 = scmp.ge.s32.totalorder %s26, 2
    %s28 = scalar_select %p27, 0, %s26
    %s29 = ssub.s32 %s16, %s28
    %p30 = scmp.eq.s32.totalorder %s29, 0
    %s32 = sadd.s32 %s31, 1
    %s33 = scalar_select %p30, %s31, %s32
    %p36 = pneg %p30
    %p37 = scmp.eq.s32.totalorder %s9, 1
    %p38 = por %p36, %p37
    %p39 = scmp.ne.s32.totalorder %s31, %s34
    %p40 = scmp.eq.s32.totalorder %s9, 0
    %p41 = por %p39, %p40
    %p42 = scmp.ne.s32.totalorder %s31, %s34
    %p43 = scmp.eq.s32.totalorder %s14, 1
    %p44 = por %p42, %p43
    %p45 = scmp.ne.s32.totalorder %s34, %s35
    %p46 = scmp.eq.s32.totalorder %s14, 0
    %p47 = por %p45, %p46
    %p48 = scmp.ne.s32.totalorder %s34, %s35
    %p49 = scmp.eq.s32.totalorder %s15, 1
    %p50 = por %p48, %p49
    %p52 = scmp.ne.s32.totalorder %s35, %s51
    %p53 = scmp.eq.s32.totalorder %s15, 0
    %p54 = por %p52, %p53
    %s55 = ssub.s32 %s17, %s24
    %p56 = scmp.eq.s32.totalorder %s55, 0
    %s58 = sadd.s32 %s57, 1
    %s59 = scalar_select %p56, %s57, %s58
    %p62 = pneg %p56
    %p63 = scmp.eq.s32.totalorder %s9, 1
    %p64 = por %p62, %p63
    %p65 = scmp.ne.s32.totalorder %s57, %s60
    %p66 = scmp.eq.s32.totalorder %s9, 0
    %p67 = por %p65, %p66
    %p68 = scmp.ne.s32.totalorder %s57, %s60
    %p69 = scmp.eq.s32.totalorder %s14, 1
    %p70 = por %p68, %p69
    %p71 = scmp.ne.s32.totalorder %s60, %s61
    %p72 = scmp.eq.s32.totalorder %s14, 0
    %p73 = por %p71, %p72
    %p74 = scmp.ne.s32.totalorder %s60, %s61
    %p75 = scmp.eq.s32.totalorder %s15, 1
    %p76 = por %p74, %p75
    %p78 = scmp.ne.s32.totalorder %s61, %s77
    %p79 = scmp.eq.s32.totalorder %s15, 0
    %p80 = por %p78, %p79
    %s81 = ssub.s32 %s17, %s24
    %p82 = scmp.eq.s32.totalorder %s81, 0
    %s84 = sadd.s32 %s83, 1
    %s85 = scalar_select %p82, %s83, %s84
    %p88 = pneg %p82
    %p89 = scmp.eq.s32.totalorder %s9, 1
    %p90 = por %p88, %p89
    %p91 = scmp.ne.s32.totalorder %s83, %s86
    %p92 = scmp.eq.s32.totalorder %s9, 0
    %p93 = por %p91, %p92
    %p94 = scmp.ne.s32.totalorder %s83, %s86
    %p95 = scmp.eq.s32.totalorder %s14, 1
    %p96 = por %p94, %p95
    %p97 = scmp.ne.s32.totalorder %s86, %s87
    %p98 = scmp.eq.s32.totalorder %s14, 0
    %p99 = por %p97, %p98
    %p100 = scmp.ne.s32.totalorder %s86, %s87
    %p101 = scmp.eq.s32.totalorder %s15, 1
    %p102 = por %p100, %p101
    %p104 = scmp.ne.s32.totalorder %s87, %s103
    %p105 = scmp.eq.s32.totalorder %s15, 0
    %p106 = por %p104, %p105
    %s107 = ssub.s32 %s16, %s28
    %s108 = ssub.s32 %s17, %s24
    %s109 = sor.u32 %s107, %s108
    %p110 = scmp.eq.s32.totalorder %s109, 0
    %s112 = sadd.s32 %s111, 1
    %s113 = scalar_select %p110, %s111, %s112
    %p116 = pneg %p110
    %p117 = scmp.eq.s32.totalorder %s9, 1
    %p118 = por %p116, %p117
    %p119 = scmp.ne.s32.totalorder %s111, %s114
    %p120 = scmp.eq.s32.totalorder %s9, 0
    %p121 = por %p119, %p120
    %p122 = scmp.ne.s32.totalorder %s111, %s114
    %p123 = scmp.eq.s32.totalorder %s14, 1
    %p124 = por %p122, %p123
    %p125 = scmp.ne.s32.totalorder %s114, %s115
    %p126 = scmp.eq.s32.totalorder %s14, 0
    %p127 = por %p125, %p126
    %p128 = scmp.ne.s32.totalorder %s114, %s115
    %p129 = scmp.eq.s32.totalorder %s15, 1
    %p130 = por %p128, %p129
    %p132 = scmp.ne.s32.totalorder %s115, %s131
    %p133 = scmp.eq.s32.totalorder %s15, 0
    %p134 = por %p132, %p133
    %p135 = scmp.le.s32.totalorder 1, %s9
    %p136 = scmp.lt.s32.totalorder %s9, 3
    %p137 = pnand %p135, %p136
    %p138 = pneg %p137
    // Predicated region
    $region9: #{_conv_bn_relu_impl.1} parent=5 // pred_check
      _
    $region10: #{_conv_bn_relu_impl.1} parent=5 // pred_check_branch
      %140 = sbr.rel (%p137) target = $region12
    $region11: #{_conv_bn_relu_impl.1} parent=5 // pred_region
      %s141 = ssub.s32 %s9, 1
      // Predicated region
      $region13: #{_conv_bn_relu_impl.1} parent=11 // pred_check
        %p142 = pneg %p73
      $region14: #{_conv_bn_relu_impl.1} parent=11 // pred_check_branch
        %144 = sbr.rel (%p142) target = $region16
      $region15: #{_conv_bn_relu_impl.1} parent=11 // pred_region
        %p145 = scmp.lt.s32.totalorder %s19, 0
        %s146 = scalar_select %p145, %s19, 0
        %s147 = smul.addr %s146, 4
        %s148 = scalar_lea.vmem %s1, %s147
      $region16: #{_conv_bn_relu_impl.1} parent=11 // pred_fallthru
        _
      // Predicated region
      $region17: #{_conv_bn_relu_impl.1} parent=11 // pred_check
        %p149 = pneg %p99
      $region18: #{_conv_bn_relu_impl.1} parent=11 // pred_check_branch
        %151 = sbr.rel (%p149) target = $region20
      $region19: #{_conv_bn_relu_impl.1} parent=11 // pred_region
        %p152 = scmp.lt.s32.totalorder %s19, 0
        %s153 = scalar_select %p152, %s19, 0
        %s154 = smul.addr %s153, 8
        %s155 = scalar_lea.vmem %s2, %s154
      $region20: #{_conv_bn_relu_impl.1} parent=11 // pred_fallthru
        _
    $region12: #{_conv_bn_relu_impl.1} parent=5 // pred_fallthru
      _
    %p156 = scmp.lt.s32.totalorder %s9, 2
    // Predicated region
    $region21: #{_conv_bn_relu_impl.1} parent=5 // pred_check
      %p157 = pneg %p156
    $region22: #{_conv_bn_relu_impl.1} parent=5 // pred_check_branch
      %159 = sbr.rel (%p157) target = $region24
    $region23: #{_conv_bn_relu_impl.1} parent=5 // pred_region
      // Predicated region
      $region25: #{_conv_bn_relu_impl.1} parent=23 // pred_check
        %p160 = pneg %p41
      $region26: #{_conv_bn_relu_impl.1} parent=23 // pred_check_branch
        %162 = sbr.rel (%p160) target = $region28
      $region27: #{_conv_bn_relu_impl.1} parent=23 // pred_region
        %p163 = scmp.lt.s32.totalorder %s16, 1
        %s164 = scalar_select %p163, %s16, 1
        %s165 = smul.addr %s164, 3
        %s166 = smul.addr %s165, 4
        %s167 = scalar_lea.vmem %s0, %s166
      $region28: #{_conv_bn_relu_impl.1} parent=23 // pred_fallthru
        _
    $region24: #{_conv_bn_relu_impl.1} parent=5 // pred_fallthru
      _
    %p168 = scmp.le.s32.totalorder 1, %s9
    %p169 = scmp.lt.s32.totalorder %s9, 3
    %p170 = pnand %p168, %p169
    %p171 = pneg %p170
    // Predicated region
    $region29: #{_conv_bn_relu_impl.1} parent=5 // pred_check
      _
    $region30: #{_conv_bn_relu_impl.1} parent=5 // pred_check_branch
      %173 = sbr.rel (%p170) target = $region32
    $region31: #{_conv_bn_relu_impl.1} parent=5 // pred_region
      %s174 = ssub.s32 %s9, 1
      %p175 = scmp.lt.s32.totalorder %s18, 1
      %s176 = scalar_select %p175, %s18, 1
      %s177 = smul.addr %s176, 3
      %s178 = smul.addr %s177, 4
      %s179 = scalar_lea.vmem %s0, %s178
      %p180 = pneg %p47
      %p181 = pneg %p44
      %p182 = scmp.lt.s32.totalorder %s19, 0
      %s183 = scalar_select %p182, %s19, 0
      %s184 = smul.addr %s183, 4
      %s185 = scalar_lea.vmem %s1, %s184
      %p186 = pneg %p73
      %p187 = pneg %p70
      %p188 = scmp.lt.s32.totalorder %s19, 0
      %s189 = scalar_select %p188, %s19, 0
      %s190 = smul.addr %s189, 8
      %s191 = scalar_lea.vmem %s2, %s190
      %p192 = pneg %p99
      %p193 = pneg %p96
      %p194 = pneg %p127
      %p195 = pneg %p124
      %p196 = scmp.lt.s32.totalorder %s18, 1
      %s197 = scalar_select %p196, %s18, 1
      %p198 = scmp.lt.s32.totalorder %s19, 0
      %s199 = scalar_select %p198, %s19, 0
      %s200 = smul.addr %s199, 3
      %s201 = smul.addr %s197, 3
      %s202 = sadd.s32 %s200, %s201
      %s203 = smul.addr %s202, 8
      %s204 = scalar_lea.vmem %s3, %s203
      %p205 = scmp.lt.s32.totalorder %s18, 1
      %s206 = scalar_select %p205, %s18, 1
      %s207 = smul.addr %s206, 3
      %s208 = smul.addr %s207, 4
      %s209 = scalar_lea.vmem %s0, %s208
      %p210 = scmp.lt.s32.totalorder %s19, 0
      %s211 = scalar_select %p210, %s19, 0
      %s212 = smul.addr %s211, 4
      %s213 = scalar_lea.vmem %s1, %s212
      %p214 = scmp.lt.s32.totalorder %s19, 0
      %s215 = scalar_select %p214, %s19, 0
      %s216 = smul.addr %s215, 8
      %s217 = scalar_lea.vmem %s2, %s216
      %p218 = scmp.lt.s32.totalorder %s18, 1
      %s219 = scalar_select %p218, %s18, 1
      %p220 = scmp.lt.s32.totalorder %s19, 0
      %s221 = scalar_select %p220, %s19, 0
      %s222 = smul.addr %s221, 3
      %s223 = smul.addr %s219, 3
      %s224 = sadd.s32 %s222, %s223
      %s225 = smul.addr %s224, 8
      %s226 = scalar_lea.vmem %s3, %s225
      %v228 = vld [vmem:[%s209] sm:$0xff]
      %v229 = vld [vmem:[%s209 + $0x8] sm:$0xf]
      %v230 = vld [vmem:[%s213] sm:$0xf]
      %s231 = scalar_lea.vmem %s213, 4
      %v232 = vld [vmem:[%s231] sm:$0xf]
      %v235 = vunpack.c.l.b16 %v228
      %v236 = vunpack.c.h.b16 %v228
      %v237 = vunpack.c.l.b16 %v229
      %v238 = vpack.c.b16 %v235, %v235
      %v239 = vpack.c.b16 %v236, %v236
      %v240 = vpack.c.b16 %v237, %v237
      %241 = vrot.lane.b32.xlu0 %v238, 127
      %v242 = vpop.permute.xlu0 %241
      %243 = vrot.lane.b32.xlu0 %v239, 127
      %v244 = vpop.permute.xlu0 %243
      %245 = vrot.lane.b32.xlu0 %v240, 127
      %v246 = vpop.permute.xlu0 %245
      %vm247 = vcmask 1039360
      %v248 = vsel %vm247, %v242, %v244
      %v249 = vsel %vm247, %v244, %v246
      %vm250 = vcmask 64512
      %v252 = vsel %vm250, %v232, 0
      %vm254 = vcmask 1043456
      %v256 = vsel %vm254, %v248, 0
      %v259 = vsel %vm254, %v249, 0
      %v262 = vsel %vm254, %v246, 0
      %264 = vmatpush.bf16.msra.mxu0 0
      %265 = vmatpush.bf16.msra.mxu0 0
      %266 = vmatpush.bf16.msra.mxu0 0
      %267 = vmatpush.bf16.msra.mxu0 0
      %268 = vmatpush.bf16.msra.mxu0 0
      %269 = vmatpush.bf16.msra.mxu0 0
      %270 = vmatpush.bf16.msra.mxu0 0
      %271 = vmatpush.bf16.msra.mxu0 %v256
      %272 = vmatmul.bf16.gmra.mxu0 %v252
      %v273 = vpop.f32.mrf.mxu0
      %v274 = vadd.f32 0.0, %v273
      %v275 = vpop.f32.mrf.mxu0
      %276 = vdwg.mxu0
      %277 = vmatpush.bf16.msra.mxu0 0
      %278 = vmatpush.bf16.msra.mxu0 0
      %279 = vmatpush.bf16.msra.mxu0 0
      %280 = vmatpush.bf16.msra.mxu0 0
      %281 = vmatpush.bf16.msra.mxu0 0
      %282 = vmatpush.bf16.msra.mxu0 0
      %283 = vmatpush.bf16.msra.mxu0 0
      %284 = vmatpush.bf16.msra.mxu0 %v259
      %285 = vmatmul.bf16.gmra.mxu0 %v252
      %v286 = vpop.f32.mrf.mxu0
      %v287 = vadd.f32 0.0, %v286
      %v288 = vpop.f32.mrf.mxu0
      %289 = vdwg.mxu0
      %290 = vmatpush.bf16.msra.mxu0 0
      %291 = vmatpush.bf16.msra.mxu0 0
      %292 = vmatpush.bf16.msra.mxu0 0
      %293 = vmatpush.bf16.msra.mxu0 0
      %294 = vmatpush.bf16.msra.mxu0 0
      %295 = vmatpush.bf16.msra.mxu0 0
      %296 = vmatpush.bf16.msra.mxu0 0
      %297 = vmatpush.bf16.msra.mxu0 %v262
      %298 = vmatmul.bf16.gmra.mxu0 %v252
      %v299 = vpop.f32.mrf.mxu0
      %v300 = vadd.f32 0.0, %v299
      %v301 = vpop.f32.mrf.mxu0
      %302 = vdwg.mxu0
      %v304 = vsel %vm250, %v230, 0
      %v307 = vsel %vm254, %v238, 0
      %v310 = vsel %vm254, %v239, 0
      %v313 = vsel %vm254, %v240, 0
      %315 = vmatpush.bf16.msra.mxu0 0
      %316 = vmatpush.bf16.msra.mxu0 0
      %317 = vmatpush.bf16.msra.mxu0 0
      %318 = vmatpush.bf16.msra.mxu0 0
      %319 = vmatpush.bf16.msra.mxu0 0
      %320 = vmatpush.bf16.msra.mxu0 0
      %321 = vmatpush.bf16.msra.mxu0 0
      %322 = vmatpush.bf16.msra.mxu0 %v307
      %323 = vmatmul.bf16.gmra.mxu0 %v304
      %v324 = vpop.f32.mrf.mxu0
      %v325 = vadd.f32 %v274, %v324
      %v326 = vpop.f32.mrf.mxu0
      %327 = vdwg.mxu0
      %328 = vmatpush.bf16.msra.mxu0 0
      %329 = vmatpush.bf16.msra.mxu0 0
      %330 = vmatpush.bf16.msra.mxu0 0
      %331 = vmatpush.bf16.msra.mxu0 0
      %332 = vmatpush.bf16.msra.mxu0 0
      %333 = vmatpush.bf16.msra.mxu0 0
      %334 = vmatpush.bf16.msra.mxu0 0
      %335 = vmatpush.bf16.msra.mxu0 %v310
      %336 = vmatmul.bf16.gmra.mxu0 %v304
      %v337 = vpop.f32.mrf.mxu0
      %v338 = vadd.f32 %v287, %v337
      %v339 = vpop.f32.mrf.mxu0
      %340 = vdwg.mxu0
      %341 = vmatpush.bf16.msra.mxu0 0
      %342 = vmatpush.bf16.msra.mxu0 0
      %343 = vmatpush.bf16.msra.mxu0 0
      %344 = vmatpush.bf16.msra.mxu0 0
      %345 = vmatpush.bf16.msra.mxu0 0
      %346 = vmatpush.bf16.msra.mxu0 0
      %347 = vmatpush.bf16.msra.mxu0 0
      %348 = vmatpush.bf16.msra.mxu0 %v313
      %349 = vmatmul.bf16.gmra.mxu0 %v304
      %v350 = vpop.f32.mrf.mxu0
      %v351 = vadd.f32 %v300, %v350
      %v352 = vpop.f32.mrf.mxu0
      %353 = vdwg.mxu0
      %s354 = scalar_lea.vmem %s213, 8
      %v355 = vld [vmem:[%s354] sm:$0xf]
      %356 = vrot.lane.b32.xlu0 %v238, 126
      %v357 = vpop.permute.xlu0 %356
      %358 = vrot.lane.b32.xlu0 %v239, 126
      %v359 = vpop.permute.xlu0 %358
      %360 = vrot.lane.b32.xlu0 %v240, 126
      %v361 = vpop.permute.xlu0 %360
      %vm362 = vcmask 1031168
      %v363 = vsel %vm362, %v357, %v359
      %v364 = vsel %vm362, %v359, %v361
      %v366 = vsel %vm250, %v355, 0
      %v369 = vsel %vm254, %v363, 0
      %v372 = vsel %vm254, %v364, 0
      %v375 = vsel %vm254, %v361, 0
      %377 = vmatpush.bf16.msra.mxu0 0
      %378 = vmatpush.bf16.msra.mxu0 0
      %379 = vmatpush.bf16.msra.mxu0 0
      %380 = vmatpush.bf16.msra.mxu0 0
      %381 = vmatpush.bf16.msra.mxu0 0
      %382 = vmatpush.bf16.msra.mxu0 0
      %383 = vmatpush.bf16.msra.mxu0 0
      %384 = vmatpush.bf16.msra.mxu0 %v369
      %385 = vmatmul.bf16.gmra.mxu0 %v366
      %v386 = vpop.f32.mrf.mxu0
      %v387 = vadd.f32 0.0, %v386
      %v388 = vpop.f32.mrf.mxu0
      %389 = vdwg.mxu0
      %390 = vmatpush.bf16.msra.mxu0 0
      %391 = vmatpush.bf16.msra.mxu0 0
      %392 = vmatpush.bf16.msra.mxu0 0
      %393 = vmatpush.bf16.msra.mxu0 0
      %394 = vmatpush.bf16.msra.mxu0 0
      %395 = vmatpush.bf16.msra.mxu0 0
      %396 = vmatpush.bf16.msra.mxu0 0
      %397 = vmatpush.bf16.msra.mxu0 %v372
      %398 = vmatmul.bf16.gmra.mxu0 %v366
      %v399 = vpop.f32.mrf.mxu0
      %v400 = vadd.f32 0.0, %v399
      %v401 = vpop.f32.mrf.mxu0
      %402 = vdwg.mxu0
      %403 = vmatpush.bf16.msra.mxu0 0
      %404 = vmatpush.bf16.msra.mxu0 0
      %405 = vmatpush.bf16.msra.mxu0 0
      %406 = vmatpush.bf16.msra.mxu0 0
      %407 = vmatpush.bf16.msra.mxu0 0
      %408 = vmatpush.bf16.msra.mxu0 0
      %409 = vmatpush.bf16.msra.mxu0 0
      %410 = vmatpush.bf16.msra.mxu0 %v375
      %411 = vmatmul.bf16.gmra.mxu0 %v366
      %v412 = vpop.f32.mrf.mxu0
      %v413 = vadd.f32 0.0, %v412
      %v414 = vpop.f32.mrf.mxu0
      %415 = vdwg.mxu0
      %v416 = vadd.f32 %v325, %v387
      %v417 = vadd.f32 %v338, %v400
      %v418 = vadd.f32 %v351, %v413
      %s419 = scalar_lea.vmem %s213, 12
      %v420 = vld [vmem:[%s419] sm:$0xf]
      %421 = vrot.lane.b32.xlu0 %v238, 110
      %v422 = vpop.permute.xlu0 %421
      %423 = vrot.lane.b32.xlu0 %v239, 110
      %v424 = vpop.permute.xlu0 %423
      %425 = vrot.lane.b32.xlu0 %v240, 110
      %v426 = vpop.permute.xlu0 %425
      %vm427 = vcmask 900096
      %v428 = vsel %vm427, %v422, %v424
      %v429 = vsel %vm427, %v424, %v426
      %v431 = vsel %vm250, %v420, 0
      %v434 = vsel %vm254, %v428, 0
      %v437 = vsel %vm254, %v429, 0
      %v440 = vsel %vm254, %v426, 0
      %442 = vmatpush.bf16.msra.mxu0 0
      %443 = vmatpush.bf16.msra.mxu0 0
      %444 = vmatpush.bf16.msra.mxu0 0
      %445 = vmatpush.bf16.msra.mxu0 0
      %446 = vmatpush.bf16.msra.mxu0 0
      %447 = vmatpush.bf16.msra.mxu0 0
      %448 = vmatpush.bf16.msra.mxu0 0
      %449 = vmatpush.bf16.msra.mxu0 %v434
      %450 = vmatmul.bf16.gmra.mxu0 %v431
      %v451 = vpop.f32.mrf.mxu0
      %v452 = vadd.f32 0.0, %v451
      %v453 = vpop.f32.mrf.mxu0
      %454 = vdwg.mxu0
      %455 = vmatpush.bf16.msra.mxu0 0
      %456 = vmatpush.bf16.msra.mxu0 0
      %457 = vmatpush.bf16.msra.mxu0 0
      %458 = vmatpush.bf16.msra.mxu0 0
      %459 = vmatpush.bf16.msra.mxu0 0
      %460 = vmatpush.bf16.msra.mxu0 0
      %461 = vmatpush.bf16.msra.mxu0 0
      %462 = vmatpush.bf16.msra.mxu0 %v437
      %463 = vmatmul.bf16.gmra.mxu0 %v431
      %v464 = vpop.f32.mrf.mxu0
      %v465 = vadd.f32 0.0, %v464
      %v466 = vpop.f32.mrf.mxu0
      %467 = vdwg.mxu0
      %468 = vmatpush.bf16.msra.mxu0 0
      %469 = vmatpush.bf16.msra.mxu0 0
      %470 = vmatpush.bf16.msra.mxu0 0
      %471 = vmatpush.bf16.msra.mxu0 0
      %472 = vmatpush.bf16.msra.mxu0 0
      %473 = vmatpush.bf16.msra.mxu0 0
      %474 = vmatpush.bf16.msra.mxu0 0
      %475 = vmatpush.bf16.msra.mxu0 %v440
      %476 = vmatmul.bf16.gmra.mxu0 %v431
      %v477 = vpop.f32.mrf.mxu0
      %v478 = vadd.f32 0.0, %v477
      %v479 = vpop.f32.mrf.mxu0
      %480 = vdwg.mxu0
      %v481 = vadd.f32 %v416, %v452
      %v482 = vadd.f32 %v417, %v465
      %v483 = vadd.f32 %v418, %v478
      %s484 = scalar_lea.vmem %s213, 16
      %v485 = vld [vmem:[%s484] sm:$0xf]
      %486 = vrot.lane.b32.xlu0 %v238, 109
      %v487 = vpop.permute.xlu0 %486
      %488 = vrot.lane.b32.xlu0 %v239, 109
      %v489 = vpop.permute.xlu0 %488
      %490 = vrot.lane.b32.xlu0 %v240, 109
      %v491 = vpop.permute.xlu0 %490
      %vm492 = vcmask 891904
      %v493 = vsel %vm492, %v487, %v489
      %v494 = vsel %vm492, %v489, %v491
      %v496 = vsel %vm250, %v485, 0
      %v499 = vsel %vm254, %v493, 0
      %v502 = vsel %vm254, %v494, 0
      %v505 = vsel %vm254, %v491, 0
      %507 = vmatpush.bf16.msra.mxu0 0
      %508 = vmatpush.bf16.msra.mxu0 0
      %509 = vmatpush.bf16.msra.mxu0 0
      %510 = vmatpush.bf16.msra.mxu0 0
      %511 = vmatpush.bf16.msra.mxu0 0
      %512 = vmatpush.bf16.msra.mxu0 0
      %513 = vmatpush.bf16.msra.mxu0 0
      %514 = vmatpush.bf16.msra.mxu0 %v499
      %515 = vmatmul.bf16.gmra.mxu0 %v496
      %v516 = vpop.f32.mrf.mxu0
      %v517 = vadd.f32 0.0, %v516
      %v518 = vpop.f32.mrf.mxu0
      %519 = vdwg.mxu0
      %520 = vmatpush.bf16.msra.mxu0 0
      %521 = vmatpush.bf16.msra.mxu0 0
      %522 = vmatpush.bf16.msra.mxu0 0
      %523 = vmatpush.bf16.msra.mxu0 0
      %524 = vmatpush.bf16.msra.mxu0 0
      %525 = vmatpush.bf16.msra.mxu0 0
      %526 = vmatpush.bf16.msra.mxu0 0
      %527 = vmatpush.bf16.msra.mxu0 %v502
      %528 = vmatmul.bf16.gmra.mxu0 %v496
      %v529 = vpop.f32.mrf.mxu0
      %v530 = vadd.f32 0.0, %v529
      %v531 = vpop.f32.mrf.mxu0
      %532 = vdwg.mxu0
      %533 = vmatpush.bf16.msra.mxu0 0
      %534 = vmatpush.bf16.msra.mxu0 0
      %535 = vmatpush.bf16.msra.mxu0 0
      %536 = vmatpush.bf16.msra.mxu0 0
      %537 = vmatpush.bf16.msra.mxu0 0
      %538 = vmatpush.bf16.msra.mxu0 0
      %539 = vmatpush.bf16.msra.mxu0 0
      %540 = vmatpush.bf16.msra.mxu0 %v505
      %541 = vmatmul.bf16.gmra.mxu0 %v496
      %v542 = vpop.f32.mrf.mxu0
      %v543 = vadd.f32 0.0, %v542
      %v544 = vpop.f32.mrf.mxu0
      %545 = vdwg.mxu0
      %v546 = vadd.f32 %v481, %v517
      %v547 = vadd.f32 %v482, %v530
      %v548 = vadd.f32 %v483, %v543
      %s549 = scalar_lea.vmem %s213, 20
      %v550 = vld [vmem:[%s549] sm:$0xf]
      %551 = vrot.lane.b32.xlu0 %v238, 108
      %v552 = vpop.permute.xlu0 %551
      %553 = vrot.lane.b32.xlu0 %v239, 108
      %v554 = vpop.permute.xlu0 %553
      %555 = vrot.lane.b32.xlu0 %v240, 108
      %v556 = vpop.permute.xlu0 %555
      %vm557 = vcmask 883712
      %v558 = vsel %vm557, %v552, %v554
      %v559 = vsel %vm557, %v554, %v556
      %v561 = vsel %vm250, %v550, 0
      %v564 = vsel %vm254, %v558, 0
      %v567 = vsel %vm254, %v559, 0
      %v570 = vsel %vm254, %v556, 0
      %572 = vmatpush.bf16.msra.mxu0 0
      %573 = vmatpush.bf16.msra.mxu0 0
      %574 = vmatpush.bf16.msra.mxu0 0
      %575 = vmatpush.bf16.msra.mxu0 0
      %576 = vmatpush.bf16.msra.mxu0 0
      %577 = vmatpush.bf16.msra.mxu0 0
      %578 = vmatpush.bf16.msra.mxu0 0
      %579 = vmatpush.bf16.msra.mxu0 %v564
      %580 = vmatmul.bf16.gmra.mxu0 %v561
      %v581 = vpop.f32.mrf.mxu0
      %v582 = vadd.f32 0.0, %v581
      %v583 = vpop.f32.mrf.mxu0
      %584 = vdwg.mxu0
      %585 = vmatpush.bf16.msra.mxu0 0
      %586 = vmatpush.bf16.msra.mxu0 0
      %587 = vmatpush.bf16.msra.mxu0 0
      %588 = vmatpush.bf16.msra.mxu0 0
      %589 = vmatpush.bf16.msra.mxu0 0
      %590 = vmatpush.bf16.msra.mxu0 0
      %591 = vmatpush.bf16.msra.mxu0 0
      %592 = vmatpush.bf16.msra.mxu0 %v567
      %593 = vmatmul.bf16.gmra.mxu0 %v561
      %v594 = vpop.f32.mrf.mxu0
      %v595 = vadd.f32 0.0, %v594
      %v596 = vpop.f32.mrf.mxu0
      %597 = vdwg.mxu0
      %598 = vmatpush.bf16.msra.mxu0 0
      %599 = vmatpush.bf16.msra.mxu0 0
      %600 = vmatpush.bf16.msra.mxu0 0
      %601 = vmatpush.bf16.msra.mxu0 0
      %602 = vmatpush.bf16.msra.mxu0 0
      %603 = vmatpush.bf16.msra.mxu0 0
      %604 = vmatpush.bf16.msra.mxu0 0
      %605 = vmatpush.bf16.msra.mxu0 %v570
      %606 = vmatmul.bf16.gmra.mxu0 %v561
      %v607 = vpop.f32.mrf.mxu0
      %v608 = vadd.f32 0.0, %v607
      %v609 = vpop.f32.mrf.mxu0
      %610 = vdwg.mxu0
      %v611 = vadd.f32 %v546, %v582
      %v612 = vadd.f32 %v547, %v595
      %v613 = vadd.f32 %v548, %v608
      %s614 = scalar_lea.vmem %s213, 24
      %v615 = vld [vmem:[%s614] sm:$0xf]
      %616 = vrot.lane.b32.xlu0 %v238, 92
      %v617 = vpop.permute.xlu0 %616
      %618 = vrot.lane.b32.xlu0 %v239, 92
      %v619 = vpop.permute.xlu0 %618
      %620 = vrot.lane.b32.xlu0 %v240, 92
      %v621 = vpop.permute.xlu0 %620
      %vm622 = vcmask 752640
      %v623 = vsel %vm622, %v617, %v619
      %v624 = vsel %vm622, %v619, %v621
      %v626 = vsel %vm250, %v615, 0
      %v629 = vsel %vm254, %v623, 0
      %v632 = vsel %vm254, %v624, 0
      %v635 = vsel %vm254, %v621, 0
      %637 = vmatpush.bf16.msra.mxu0 0
      %638 = vmatpush.bf16.msra.mxu0 0
      %639 = vmatpush.bf16.msra.mxu0 0
      %640 = vmatpush.bf16.msra.mxu0 0
      %641 = vmatpush.bf16.msra.mxu0 0
      %642 = vmatpush.bf16.msra.mxu0 0
      %643 = vmatpush.bf16.msra.mxu0 0
      %644 = vmatpush.bf16.msra.mxu0 %v629
      %645 = vmatmul.bf16.gmra.mxu0 %v626
      %v646 = vpop.f32.mrf.mxu0
      %v647 = vadd.f32 0.0, %v646
      %v648 = vpop.f32.mrf.mxu0
      %649 = vdwg.mxu0
      %650 = vmatpush.bf16.msra.mxu0 0
      %651 = vmatpush.bf16.msra.mxu0 0
      %652 = vmatpush.bf16.msra.mxu0 0
      %653 = vmatpush.bf16.msra.mxu0 0
      %654 = vmatpush.bf16.msra.mxu0 0
      %655 = vmatpush.bf16.msra.mxu0 0
      %656 = vmatpush.bf16.msra.mxu0 0
      %657 = vmatpush.bf16.msra.mxu0 %v632
      %658 = vmatmul.bf16.gmra.mxu0 %v626
      %v659 = vpop.f32.mrf.mxu0
      %v660 = vadd.f32 0.0, %v659
      %v661 = vpop.f32.mrf.mxu0
      %662 = vdwg.mxu0
      %663 = vmatpush.bf16.msra.mxu0 0
      %664 = vmatpush.bf16.msra.mxu0 0
      %665 = vmatpush.bf16.msra.mxu0 0
      %666 = vmatpush.bf16.msra.mxu0 0
      %667 = vmatpush.bf16.msra.mxu0 0
      %668 = vmatpush.bf16.msra.mxu0 0
      %669 = vmatpush.bf16.msra.mxu0 0
      %670 = vmatpush.bf16.msra.mxu0 %v635
      %671 = vmatmul.bf16.gmra.mxu0 %v626
      %v672 = vpop.f32.mrf.mxu0
      %v673 = vadd.f32 0.0, %v672
      %v674 = vpop.f32.mrf.mxu0
      %675 = vdwg.mxu0
      %v676 = vadd.f32 %v611, %v647
      %v677 = vadd.f32 %v612, %v660
      %v678 = vadd.f32 %v613, %v673
      %s679 = scalar_lea.vmem %s213, 28
      %v680 = vld [vmem:[%s679] sm:$0xf]
      %681 = vrot.lane.b32.xlu0 %v238, 91
      %v682 = vpop.permute.xlu0 %681
      %683 = vrot.lane.b32.xlu0 %v239, 91
      %v684 = vpop.permute.xlu0 %683
      %685 = vrot.lane.b32.xlu0 %v240, 91
      %v686 = vpop.permute.xlu0 %685
      %vm687 = vcmask 744448
      %v688 = vsel %vm687, %v682, %v684
      %v689 = vsel %vm687, %v684, %v686
      %v691 = vsel %vm250, %v680, 0
      %v694 = vsel %vm254, %v688, 0
      %v697 = vsel %vm254, %v689, 0
      %v700 = vsel %vm254, %v686, 0
      %702 = vmatpush.bf16.msra.mxu0 0
      %703 = vmatpush.bf16.msra.mxu0 0
      %704 = vmatpush.bf16.msra.mxu0 0
      %705 = vmatpush.bf16.msra.mxu0 0
      %706 = vmatpush.bf16.msra.mxu0 0
      %707 = vmatpush.bf16.msra.mxu0 0
      %708 = vmatpush.bf16.msra.mxu0 0
      %709 = vmatpush.bf16.msra.mxu0 %v694
      %710 = vmatmul.bf16.gmra.mxu0 %v691
      %v711 = vpop.f32.mrf.mxu0
      %v712 = vadd.f32 0.0, %v711
      %v713 = vpop.f32.mrf.mxu0
      %714 = vdwg.mxu0
      %715 = vmatpush.bf16.msra.mxu0 0
      %716 = vmatpush.bf16.msra.mxu0 0
      %717 = vmatpush.bf16.msra.mxu0 0
      %718 = vmatpush.bf16.msra.mxu0 0
      %719 = vmatpush.bf16.msra.mxu0 0
      %720 = vmatpush.bf16.msra.mxu0 0
      %721 = vmatpush.bf16.msra.mxu0 0
      %722 = vmatpush.bf16.msra.mxu0 %v697
      %723 = vmatmul.bf16.gmra.mxu0 %v691
      %v724 = vpop.f32.mrf.mxu0
      %v725 = vadd.f32 0.0, %v724
      %v726 = vpop.f32.mrf.mxu0
      %727 = vdwg.mxu0
      %728 = vmatpush.bf16.msra.mxu0 0
      %729 = vmatpush.bf16.msra.mxu0 0
      %730 = vmatpush.bf16.msra.mxu0 0
      %731 = vmatpush.bf16.msra.mxu0 0
      %732 = vmatpush.bf16.msra.mxu0 0
      %733 = vmatpush.bf16.msra.mxu0 0
      %734 = vmatpush.bf16.msra.mxu0 0
      %735 = vmatpush.bf16.msra.mxu0 %v700
      %736 = vmatmul.bf16.gmra.mxu0 %v691
      %v737 = vpop.f32.mrf.mxu0
      %v738 = vadd.f32 0.0, %v737
      %v739 = vpop.f32.mrf.mxu0
      %740 = vdwg.mxu0
      %v741 = vadd.f32 %v676, %v712
      %v742 = vadd.f32 %v677, %v725
      %v743 = vadd.f32 %v678, %v738
      %s744 = scalar_lea.vmem %s213, 32
      %v745 = vld [vmem:[%s744] sm:$0xf]
      %746 = vrot.lane.b32.xlu0 %v238, 90
      %v747 = vpop.permute.xlu0 %746
      %748 = vrot.lane.b32.xlu0 %v239, 90
      %v749 = vpop.permute.xlu0 %748
      %750 = vrot.lane.b32.xlu0 %v240, 90
      %v751 = vpop.permute.xlu0 %750
      %vm752 = vcmask 736256
      %v753 = vsel %vm752, %v747, %v749
      %v754 = vsel %vm752, %v749, %v751
      %v756 = vsel %vm250, %v745, 0
      %v759 = vsel %vm254, %v753, 0
      %v762 = vsel %vm254, %v754, 0
      %v765 = vsel %vm254, %v751, 0
      %767 = vmatpush.bf16.msra.mxu0 0
      %768 = vmatpush.bf16.msra.mxu0 0
      %769 = vmatpush.bf16.msra.mxu0 0
      %770 = vmatpush.bf16.msra.mxu0 0
      %771 = vmatpush.bf16.msra.mxu0 0
      %772 = vmatpush.bf16.msra.mxu0 0
      %773 = vmatpush.bf16.msra.mxu0 0
      %774 = vmatpush.bf16.msra.mxu0 %v759
      %775 = vmatmul.bf16.gmra.mxu0 %v756
      %v776 = vpop.f32.mrf.mxu0
      %v777 = vadd.f32 0.0, %v776
      %v778 = vpop.f32.mrf.mxu0
      %779 = vdwg.mxu0
      %780 = vmatpush.bf16.msra.mxu0 0
      %781 = vmatpush.bf16.msra.mxu0 0
      %782 = vmatpush.bf16.msra.mxu0 0
      %783 = vmatpush.bf16.msra.mxu0 0
      %784 = vmatpush.bf16.msra.mxu0 0
      %785 = vmatpush.bf16.msra.mxu0 0
      %786 = vmatpush.bf16.msra.mxu0 0
      %787 = vmatpush.bf16.msra.mxu0 %v762
      %788 = vmatmul.bf16.gmra.mxu0 %v756
      %v789 = vpop.f32.mrf.mxu0
      %v790 = vadd.f32 0.0, %v789
      %v791 = vpop.f32.mrf.mxu0
      %792 = vdwg.mxu0
      %793 = vmatpush.bf16.msra.mxu0 0
      %794 = vmatpush.bf16.msra.mxu0 0
      %795 = vmatpush.bf16.msra.mxu0 0
      %796 = vmatpush.bf16.msra.mxu0 0
      %797 = vmatpush.bf16.msra.mxu0 0
      %798 = vmatpush.bf16.msra.mxu0 0
      %799 = vmatpush.bf16.msra.mxu0 0
      %800 = vmatpush.bf16.msra.mxu0 %v765
      %801 = vmatmul.bf16.gmra.mxu0 %v756
      %v802 = vpop.f32.mrf.mxu0
      %v803 = vadd.f32 0.0, %v802
      %v804 = vpop.f32.mrf.mxu0
      %805 = vdwg.mxu0
      %v806 = vadd.f32 %v741, %v777
      %v807 = vadd.f32 %v742, %v790
      %v808 = vadd.f32 %v743, %v803
      %v809 = vld [vmem:[%s217] sm:$0xff]
      %811 = vset.pattern.permute.xlu0 0
      %812 = vperm.xlu0 %811, %v809
      %v813 = vpop.permute.xlu0 %812
      %v815 = vadd.f32 %v806, %v813
      %v816 = vadd.f32 %v807, %v813
      %v817 = vadd.f32 %v808, %v813
      %v818 = vmax.f32 %v815, 0.0
      %v819 = vmax.f32 %v816, 0.0
      %v820 = vmax.f32 %v817, 0.0
      %821 = vst [vmem:[%s226] sm:$0xff] %v818
      %822 = vst [vmem:[%s226 + $0x8] sm:$0xff] %v819
      %vm823 = vcmask 261120
      %824 = vst.msk [vmem:[%s226 + $0x10] sm:$0xff] %vm823, %v820
      %p825 = scmp.lt.s32.totalorder %s18, 1
      %s826 = scalar_select %p825, %s18, 1
      %p827 = scmp.lt.s32.totalorder %s19, 0
      %s828 = scalar_select %p827, %s19, 0
      %s829 = smul.addr %s828, 3
      %s830 = smul.addr %s826, 3
      %s831 = sadd.s32 %s829, %s830
      %s832 = smul.addr %s831, 8
      %s833 = scalar_lea.vmem %s3, %s832
      // Predicated region
      $region33: #{_conv_bn_relu_impl.1} parent=31 // pred_check
        %p834 = pneg %p124
      $region34: #{_conv_bn_relu_impl.1} parent=31 // pred_check_branch
        %836 = sbr.rel (%p834) target = $region36
      $region35: #{_conv_bn_relu_impl.1} parent=31 // pred_region
        _
      $region36: #{_conv_bn_relu_impl.1} parent=31 // pred_fallthru
        _
    $region32: #{_conv_bn_relu_impl.1} parent=5 // pred_fallthru
      _
    %p837 = scmp.le.s32.totalorder 2, %s9
    // Predicated region
    $region37: #{_conv_bn_relu_impl.1} parent=5 // pred_check
      %p838 = pneg %p837
    $region38: #{_conv_bn_relu_impl.1} parent=5 // pred_check_branch
      %840 = sbr.rel (%p838) target = $region40
    $region39: #{_conv_bn_relu_impl.1} parent=5 // pred_region
      %s841 = ssub.s32 %s9, 2
      // Predicated region
      $region41: #{_conv_bn_relu_impl.1} parent=39 // pred_check
        %p842 = pneg %p130
      $region42: #{_conv_bn_relu_impl.1} parent=39 // pred_check_branch
        %844 = sbr.rel (%p842) target = $region44
      $region43: #{_conv_bn_relu_impl.1} parent=39 // pred_region
        %p845 = scmp.lt.s32.totalorder %s20, 1
        %s846 = scalar_select %p845, %s20, 1
        %p847 = scmp.lt.s32.totalorder %s21, 0
        %s848 = scalar_select %p847, %s21, 0
        %s849 = smul.addr %s848, 3
        %s850 = smul.addr %s846, 3
        %s851 = sadd.s32 %s849, %s850
        %s852 = smul.addr %s851, 8
        %s853 = scalar_lea.vmem %s3, %s852
      $region44: #{_conv_bn_relu_impl.1} parent=39 // pred_fallthru
        _
    $region40: #{_conv_bn_relu_impl.1} parent=5 // pred_fallthru
      _
  $region6: #{_conv_bn_relu_impl.1} parent=0 // loop_footer
    %s13 = sadd.s32 1, %s9
  $region7: #{_conv_bn_relu_impl.1} parent=0 // loop_footer_branch
    %8 = sbr.rel target = $region3
  $region8: #{_conv_bn_relu_impl.1} parent=0 // loop_exit
    _

// kernel: _conv_bn_relu_impl.1
$region0: #{_conv_bn_relu_impl.1}
  #allocation0 [shape = 'u32[]', space=smem, size = 0x4, offset = 0x4, fixed_abs, tag = 'smem constant byte address 0x4 - core index']
  #allocation1 [shape = 'u32[72,128]{1,0:T(1,128)}', space=vmem, size = 0x9000, scoped, tag = 'internal scratch']
  %s0 = inlined_call_operand.vmem [shape: bf16[2,8,384], index: 0, kind: input, shape index: {}]
  %s1 = inlined_call_operand.vmem [shape: bf16[9,8,8], index: 1, kind: input, shape index: {}]
  %s2 = inlined_call_operand.vmem [shape: f32[8,1], index: 2, kind: input, shape index: {}]
  %s3 = inlined_call_operand.vmem [shape: f32[2,8,288], index: 3, kind: output, shape index: {}]
  %s4 = sld [smem:[#allocation0]]
  $region45: #{_conv_bn_relu_impl.1} parent=0
    _
  %s6 = ssub.s32 1, %s4
  %s7 = scalar_select 0, %s6, %s4
  loop: start=0, step=1, limit=4
  $region2: #{_conv_bn_relu_impl.1} parent=0 // loop_pre_header
    _
  $region3: #{_conv_bn_relu_impl.1} parent=0 // loop_header
    %s9 = sphi 0, %s13
    %p10 = scmp.ge.s32.totalorder %s9, 4
    %s16 = sphi 0, %s28
    %s17 = sphi 0, %s24
    %s18 = sphi 0, %s16
    %s19 = sphi 0, %s17
    %s20 = sphi 0, %s18
    %s21 = sphi 0, %s19
    %s31 = sphi 0, %s33
    %s34 = sphi 0, %s31
    %s35 = sphi 0, %s34
    %s51 = sphi 0, %s35
    %s57 = sphi 0, %s59
    %s60 = sphi 0, %s57
    %s61 = sphi 0, %s60
    %s77 = sphi 0, %s61
    %s83 = sphi 0, %s85
    %s86 = sphi 0, %s83
    %s87 = sphi 0, %s86
    %s103 = sphi 0, %s87
    %s111 = sphi 0, %s113
    %s114 = sphi 0, %s111
    %s115 = sphi 0, %s114
    %s131 = sphi 0, %s115
  $region4: #{_conv_bn_relu_impl.1} parent=0 // loop_header_branch
    %12 = sbr.rel (%p10) target = $region8
  $region5: #{_conv_bn_relu_impl.1} parent=0 // loop_body
    %s14 = ssub.s32 %s9, 1
    %s15 = ssub.s32 %s9, 2
    %s22 = sadd.s32 1, %s17
    %p23 = scmp.ge.s32.totalorder %s22, 1
    %s24 = scalar_select %p23, 0, %s22
    %s25 = sadd.s32 1, %s16
    %s26 = scalar_select %p23, %s25, %s16
    %p27 = scmp.ge.s32.totalorder %s26, 2
    %s28 = scalar_select %p27, 0, %s26
    %s29 = ssub.s32 %s16, %s28
    %p30 = scmp.eq.s32.totalorder %s29, 0
    %s32 = sadd.s32 %s31, 1
    %s33 = scalar_select %p30, %s31, %s32
    %p36 = pneg %p30
    %p37 = scmp.eq.s32.totalorder %s9, 1
    %p38 = por %p36, %p37
    %p39 = scmp.ne.s32.totalorder %s31, %s34
    %p40 = scmp.eq.s32.totalorder %s9, 0
    %p41 = por %p39, %p40
    %p42 = scmp.ne.s32.totalorder %s31, %s34
    %p43 = scmp.eq.s32.totalorder %s14, 1
    %p44 = por %p42, %p43
    %p45 = scmp.ne.s32.totalorder %s34, %s35
    %p46 = scmp.eq.s32.totalorder %s14, 0
    %p47 = por %p45, %p46
    %p48 = scmp.ne.s32.totalorder %s34, %s35
    %p49 = scmp.eq.s32.totalorder %s15, 1
    %p50 = por %p48, %p49
    %p52 = scmp.ne.s32.totalorder %s35, %s51
    %p53 = scmp.eq.s32.totalorder %s15, 0
    %p54 = por %p52, %p53
    %s55 = ssub.s32 %s17, %s24
    %p56 = scmp.eq.s32.totalorder %s55, 0
    %s58 = sadd.s32 %s57, 1
    %s59 = scalar_select %p56, %s57, %s58
    %p62 = pneg %p56
    %p63 = scmp.eq.s32.totalorder %s9, 1
    %p64 = por %p62, %p63
    %p65 = scmp.ne.s32.totalorder %s57, %s60
    %p66 = scmp.eq.s32.totalorder %s9, 0
    %p67 = por %p65, %p66
    %p68 = scmp.ne.s32.totalorder %s57, %s60
    %p69 = scmp.eq.s32.totalorder %s14, 1
    %p70 = por %p68, %p69
    %p71 = scmp.ne.s32.totalorder %s60, %s61
    %p72 = scmp.eq.s32.totalorder %s14, 0
    %p73 = por %p71, %p72
    %p74 = scmp.ne.s32.totalorder %s60, %s61
    %p75 = scmp.eq.s32.totalorder %s15, 1
    %p76 = por %p74, %p75
    %p78 = scmp.ne.s32.totalorder %s61, %s77
    %p79 = scmp.eq.s32.totalorder %s15, 0
    %p80 = por %p78, %p79
    %s81 = ssub.s32 %s17, %s24
    %p82 = scmp.eq.s32.totalorder %s81, 0
    %s84 = sadd.s32 %s83, 1
    %s85 = scalar_select %p82, %s83, %s84
    %p88 = pneg %p82
    %p89 = scmp.eq.s32.totalorder %s9, 1
    %p90 = por %p88, %p89
    %p91 = scmp.ne.s32.totalorder %s83, %s86
    %p92 = scmp.eq.s32.totalorder %s9, 0
    %p93 = por %p91, %p92
    %p94 = scmp.ne.s32.totalorder %s83, %s86
    %p95 = scmp.eq.s32.totalorder %s14, 1
    %p96 = por %p94, %p95
    %p97 = scmp.ne.s32.totalorder %s86, %s87
    %p98 = scmp.eq.s32.totalorder %s14, 0
    %p99 = por %p97, %p98
    %p100 = scmp.ne.s32.totalorder %s86, %s87
    %p101 = scmp.eq.s32.totalorder %s15, 1
    %p102 = por %p100, %p101
    %p104 = scmp.ne.s32.totalorder %s87, %s103
    %p105 = scmp.eq.s32.totalorder %s15, 0
    %p106 = por %p104, %p105
    %s107 = ssub.s32 %s16, %s28
    %s108 = ssub.s32 %s17, %s24
    %s109 = sor.u32 %s107, %s108
    %p110 = scmp.eq.s32.totalorder %s109, 0
    %s112 = sadd.s32 %s111, 1
    %s113 = scalar_select %p110, %s111, %s112
    %p116 = pneg %p110
    %p117 = scmp.eq.s32.totalorder %s9, 1
    %p118 = por %p116, %p117
    %p119 = scmp.ne.s32.totalorder %s111, %s114
    %p120 = scmp.eq.s32.totalorder %s9, 0
    %p121 = por %p119, %p120
    %p122 = scmp.ne.s32.totalorder %s111, %s114
    %p123 = scmp.eq.s32.totalorder %s14, 1
    %p124 = por %p122, %p123
    %p125 = scmp.ne.s32.totalorder %s114, %s115
    %p126 = scmp.eq.s32.totalorder %s14, 0
    %p127 = por %p125, %p126
    %p128 = scmp.ne.s32.totalorder %s114, %s115
    %p129 = scmp.eq.s32.totalorder %s15, 1
    %p130 = por %p128, %p129
    %p132 = scmp.ne.s32.totalorder %s115, %s131
    %p133 = scmp.eq.s32.totalorder %s15, 0
    %p134 = por %p132, %p133
    %p135 = scmp.le.s32.totalorder 1, %s9
    %p136 = scmp.lt.s32.totalorder %s9, 3
    %p137 = pnand %p135, %p136
    %p138 = pneg %p137
    // Predicated region
    $region9: #{_conv_bn_relu_impl.1} parent=5 // pred_check
      _
    $region10: #{_conv_bn_relu_impl.1} parent=5 // pred_check_branch
      %140 = sbr.rel (%p137) target = $region12
    $region11: #{_conv_bn_relu_impl.1} parent=5 // pred_region
      %s141 = ssub.s32 %s9, 1
      // Predicated region
      $region13: #{_conv_bn_relu_impl.1} parent=11 // pred_check
        %p142 = pneg %p73
      $region14: #{_conv_bn_relu_impl.1} parent=11 // pred_check_branch
        %144 = sbr.rel (%p142) target = $region16
      $region15: #{_conv_bn_relu_impl.1} parent=11 // pred_region
        %p145 = scmp.lt.s32.totalorder %s19, 0
        %s146 = scalar_select %p145, %s19, 0
        %s147 = smul.addr %s146, 4
        %s148 = scalar_lea.vmem %s1, %s147
      $region16: #{_conv_bn_relu_impl.1} parent=11 // pred_fallthru
        _
      // Predicated region
      $region17: #{_conv_bn_relu_impl.1} parent=11 // pred_check
        %p149 = pneg %p99
      $region18: #{_conv_bn_relu_impl.1} parent=11 // pred_check_branch
        %151 = sbr.rel (%p149) target = $region20
      $region19: #{_conv_bn_relu_impl.1} parent=11 // pred_region
        %p152 = scmp.lt.s32.totalorder %s19, 0
        %s153 = scalar_select %p152, %s19, 0
        %s154 = smul.addr %s153, 8
        %s155 = scalar_lea.vmem %s2, %s154
      $region20: #{_conv_bn_relu_impl.1} parent=11 // pred_fallthru
        _
    $region12: #{_conv_bn_relu_impl.1} parent=5 // pred_fallthru
      _
    %p156 = scmp.lt.s32.totalorder %s9, 2
    // Predicated region
    $region21: #{_conv_bn_relu_impl.1} parent=5 // pred_check
      %p157 = pneg %p156
    $region22: #{_conv_bn_relu_impl.1} parent=5 // pred_check_branch
      %159 = sbr.rel (%p157) target = $region24
    $region23: #{_conv_bn_relu_impl.1} parent=5 // pred_region
      // Predicated region
      $region25: #{_conv_bn_relu_impl.1} parent=23 // pred_check
        %p160 = pneg %p41
      $region26: #{_conv_bn_relu_impl.1} parent=23 // pred_check_branch
        %162 = sbr.rel (%p160) target = $region28
      $region27: #{_conv_bn_relu_impl.1} parent=23 // pred_region
        %p163 = scmp.lt.s32.totalorder %s16, 1
        %s164 = scalar_select %p163, %s16, 1
        %s165 = smul.addr %s164, 3
        %s166 = smul.addr %s165, 4
        %s167 = scalar_lea.vmem %s0, %s166
      $region28: #{_conv_bn_relu_impl.1} parent=23 // pred_fallthru
        _
    $region24: #{_conv_bn_relu_impl.1} parent=5 // pred_fallthru
      _
    %p168 = scmp.le.s32.totalorder 1, %s9
    %p169 = scmp.lt.s32.totalorder %s9, 3
    %p170 = pnand %p168, %p169
    %p171 = pneg %p170
    // Predicated region
    $region29: #{_conv_bn_relu_impl.1} parent=5 // pred_check
      _
    $region30: #{_conv_bn_relu_impl.1} parent=5 // pred_check_branch
      %173 = sbr.rel (%p170) target = $region32
    $region31: #{_conv_bn_relu_impl.1} parent=5 // pred_region
      %s174 = ssub.s32 %s9, 1
      %p175 = scmp.lt.s32.totalorder %s18, 1
      %s176 = scalar_select %p175, %s18, 1
      %s177 = smul.addr %s176, 3
      %s178 = smul.addr %s177, 4
      %s179 = scalar_lea.vmem %s0, %s178
      %p180 = pneg %p47
      %p181 = pneg %p44
      %p182 = scmp.lt.s32.totalorder %s19, 0
      %s183 = scalar_select %p182, %s19, 0
      %s184 = smul.addr %s183, 4
      %s185 = scalar_lea.vmem %s1, %s184
      %p186 = pneg %p73
      %p187 = pneg %p70
      %p188 = scmp.lt.s32.totalorder %s19, 0
      %s189 = scalar_select %p188, %s19, 0
      %s190 = smul.addr %s189, 8
      %s191 = scalar_lea.vmem %s2, %s190
      %p192 = pneg %p99
      %p193 = pneg %p96
      %p194 = pneg %p127
      %p195 = pneg %p124
      %p196 = scmp.lt.s32.totalorder %s18, 1
      %s197 = scalar_select %p196, %s18, 1
      %p198 = scmp.lt.s32.totalorder %s19, 0
      %s199 = scalar_select %p198, %s19, 0
      %s200 = smul.addr %s199, 3
      %s201 = smul.addr %s197, 3
      %s202 = sadd.s32 %s200, %s201
      %s203 = smul.addr %s202, 8
      %s204 = scalar_lea.vmem %s3, %s203
      %p205 = scmp.lt.s32.totalorder %s18, 1
      %s206 = scalar_select %p205, %s18, 1
      %s207 = smul.addr %s206, 3
      %s208 = smul.addr %s207, 4
      %s209 = scalar_lea.vmem %s0, %s208
      %p210 = scmp.lt.s32.totalorder %s19, 0
      %s211 = scalar_select %p210, %s19, 0
      %s212 = smul.addr %s211, 4
      %s213 = scalar_lea.vmem %s1, %s212
      %p214 = scmp.lt.s32.totalorder %s19, 0
      %s215 = scalar_select %p214, %s19, 0
      %s216 = smul.addr %s215, 8
      %s217 = scalar_lea.vmem %s2, %s216
      %p218 = scmp.lt.s32.totalorder %s18, 1
      %s219 = scalar_select %p218, %s18, 1
      %p220 = scmp.lt.s32.totalorder %s19, 0
      %s221 = scalar_select %p220, %s19, 0
      %s222 = smul.addr %s221, 3
      %s223 = smul.addr %s219, 3
      %s224 = sadd.s32 %s222, %s223
      %s225 = smul.addr %s224, 8
      %s226 = scalar_lea.vmem %s3, %s225
      %v228 = vld [vmem:[%s209] sm:$0xff]
      %v229 = vld [vmem:[%s209 + $0x8] sm:$0xf]
      %v230 = vld [vmem:[%s213] sm:$0xf]
      %s231 = scalar_lea.vmem %s213, 4
      %v232 = vld [vmem:[%s231] sm:$0xf]
      %v235 = vunpack.c.l.b16 %v228
      %v236 = vunpack.c.h.b16 %v228
      %v237 = vunpack.c.l.b16 %v229
      %v238 = vpack.c.b16 %v235, %v235
      %v239 = vpack.c.b16 %v236, %v236
      %v240 = vpack.c.b16 %v237, %v237
      %241 = vrot.lane.b32.xlu0 %v238, 127
      %v242 = vpop.permute.xlu0 %241
      %243 = vrot.lane.b32.xlu0 %v239, 127
      %v244 = vpop.permute.xlu0 %243
      %245 = vrot.lane.b32.xlu0 %v240, 127
      %v246 = vpop.permute.xlu0 %245
      %vm247 = vcmask 1039360
      %v248 = vsel %vm247, %v242, %v244
      %v249 = vsel %vm247, %v244, %v246
      %vm250 = vcmask 64512
      %v252 = vsel %vm250, %v232, 0
      %vm254 = vcmask 1043456
      %v256 = vsel %vm254, %v248, 0
      %v259 = vsel %vm254, %v249, 0
      %v262 = vsel %vm254, %v246, 0
      %264 = vmatpush.bf16.msra.mxu0 0
      %265 = vmatpush.bf16.msra.mxu0 0
      %266 = vmatpush.bf16.msra.mxu0 0
      %267 = vmatpush.bf16.msra.mxu0 0
      %268 = vmatpush.bf16.msra.mxu0 0
      %269 = vmatpush.bf16.msra.mxu0 0
      %270 = vmatpush.bf16.msra.mxu0 0
      %271 = vmatpush.bf16.msra.mxu0 %v256
      %272 = vmatmul.bf16.gmra.mxu0 %v252
      %v273 = vpop.f32.mrf.mxu0
      %v274 = vadd.f32 0.0, %v273
      %v275 = vpop.f32.mrf.mxu0
      %276 = vdwg.mxu0
      %277 = vmatpush.bf16.msra.mxu0 0
      %278 = vmatpush.bf16.msra.mxu0 0
      %279 = vmatpush.bf16.msra.mxu0 0
      %280 = vmatpush.bf16.msra.mxu0 0
      %281 = vmatpush.bf16.msra.mxu0 0
      %282 = vmatpush.bf16.msra.mxu0 0
      %283 = vmatpush.bf16.msra.mxu0 0
      %284 = vmatpush.bf16.msra.mxu0 %v259
      %285 = vmatmul.bf16.gmra.mxu0 %v252
      %v286 = vpop.f32.mrf.mxu0
      %v287 = vadd.f32 0.0, %v286
      %v288 = vpop.f32.mrf.mxu0
      %289 = vdwg.mxu0
      %290 = vmatpush.bf16.msra.mxu0 0
      %291 = vmatpush.bf16.msra.mxu0 0
      %292 = vmatpush.bf16.msra.mxu0 0
      %293 = vmatpush.bf16.msra.mxu0 0
      %294 = vmatpush.bf16.msra.mxu0 0
      %295 = vmatpush.bf16.msra.mxu0 0
      %296 = vmatpush.bf16.msra.mxu0 0
      %297 = vmatpush.bf16.msra.mxu0 %v262
      %298 = vmatmul.bf16.gmra.mxu0 %v252
      %v299 = vpop.f32.mrf.mxu0
      %v300 = vadd.f32 0.0, %v299
      %v301 = vpop.f32.mrf.mxu0
      %302 = vdwg.mxu0
      %v304 = vsel %vm250, %v230, 0
      %v307 = vsel %vm254, %v238, 0
      %v310 = vsel %vm254, %v239, 0
      %v313 = vsel %vm254, %v240, 0
      %315 = vmatpush.bf16.msra.mxu0 0
      %316 = vmatpush.bf16.msra.mxu0 0
      %317 = vmatpush.bf16.msra.mxu0 0
      %318 = vmatpush.bf16.msra.mxu0 0
      %319 = vmatpush.bf16.msra.mxu0 0
      %320 = vmatpush.bf16.msra.mxu0 0
      %321 = vmatpush.bf16.msra.mxu0 0
      %322 = vmatpush.bf16.msra.mxu0 %v307
      %323 = vmatmul.bf16.gmra.mxu0 %v304
      %v324 = vpop.f32.mrf.mxu0
      %v325 = vadd.f32 %v274, %v324
      %v326 = vpop.f32.mrf.mxu0
      %327 = vdwg.mxu0
      %328 = vmatpush.bf16.msra.mxu0 0
      %329 = vmatpush.bf16.msra.mxu0 0
      %330 = vmatpush.bf16.msra.mxu0 0
      %331 = vmatpush.bf16.msra.mxu0 0
      %332 = vmatpush.bf16.msra.mxu0 0
      %333 = vmatpush.bf16.msra.mxu0 0
      %334 = vmatpush.bf16.msra.mxu0 0
      %335 = vmatpush.bf16.msra.mxu0 %v310
      %336 = vmatmul.bf16.gmra.mxu0 %v304
      %v337 = vpop.f32.mrf.mxu0
      %v338 = vadd.f32 %v287, %v337
      %v339 = vpop.f32.mrf.mxu0
      %340 = vdwg.mxu0
      %341 = vmatpush.bf16.msra.mxu0 0
      %342 = vmatpush.bf16.msra.mxu0 0
      %343 = vmatpush.bf16.msra.mxu0 0
      %344 = vmatpush.bf16.msra.mxu0 0
      %345 = vmatpush.bf16.msra.mxu0 0
      %346 = vmatpush.bf16.msra.mxu0 0
      %347 = vmatpush.bf16.msra.mxu0 0
      %348 = vmatpush.bf16.msra.mxu0 %v313
      %349 = vmatmul.bf16.gmra.mxu0 %v304
      %v350 = vpop.f32.mrf.mxu0
      %v351 = vadd.f32 %v300, %v350
      %v352 = vpop.f32.mrf.mxu0
      %353 = vdwg.mxu0
      %s354 = scalar_lea.vmem %s213, 8
      %v355 = vld [vmem:[%s354] sm:$0xf]
      %356 = vrot.lane.b32.xlu0 %v238, 126
      %v357 = vpop.permute.xlu0 %356
      %358 = vrot.lane.b32.xlu0 %v239, 126
      %v359 = vpop.permute.xlu0 %358
      %360 = vrot.lane.b32.xlu0 %v240, 126
      %v361 = vpop.permute.xlu0 %360
      %vm362 = vcmask 1031168
      %v363 = vsel %vm362, %v357, %v359
      %v364 = vsel %vm362, %v359, %v361
      %v366 = vsel %vm250, %v355, 0
      %v369 = vsel %vm254, %v363, 0
      %v372 = vsel %vm254, %v364, 0
      %v375 = vsel %vm254, %v361, 0
      %377 = vmatpush.bf16.msra.mxu0 0
      %378 = vmatpush.bf16.msra.mxu0 0
      %379 = vmatpush.bf16.msra.mxu0 0
      %380 = vmatpush.bf16.msra.mxu0 0
      %381 = vmatpush.bf16.msra.mxu0 0
      %382 = vmatpush.bf16.msra.mxu0 0
      %383 = vmatpush.bf16.msra.mxu0 0
      %384 = vmatpush.bf16.msra.mxu0 %v369
      %385 = vmatmul.bf16.gmra.mxu0 %v366
      %v386 = vpop.f32.mrf.mxu0
      %v387 = vadd.f32 0.0, %v386
      %v388 = vpop.f32.mrf.mxu0
      %389 = vdwg.mxu0
      %390 = vmatpush.bf16.msra.mxu0 0
      %391 = vmatpush.bf16.msra.mxu0 0
      %392 = vmatpush.bf16.msra.mxu0 0
      %393 = vmatpush.bf16.msra.mxu0 0
      %394 = vmatpush.bf16.msra.mxu0 0
      %395 = vmatpush.bf16.msra.mxu0 0
      %396 = vmatpush.bf16.msra.mxu0 0
      %397 = vmatpush.bf16.msra.mxu0 %v372
      %398 = vmatmul.bf16.gmra.mxu0 %v366
      %v399 = vpop.f32.mrf.mxu0
      %v400 = vadd.f32 0.0, %v399
      %v401 = vpop.f32.mrf.mxu0
      %402 = vdwg.mxu0
      %403 = vmatpush.bf16.msra.mxu0 0
      %404 = vmatpush.bf16.msra.mxu0 0
      %405 = vmatpush.bf16.msra.mxu0 0
      %406 = vmatpush.bf16.msra.mxu0 0
      %407 = vmatpush.bf16.msra.mxu0 0
      %408 = vmatpush.bf16.msra.mxu0 0
      %409 = vmatpush.bf16.msra.mxu0 0
      %410 = vmatpush.bf16.msra.mxu0 %v375
      %411 = vmatmul.bf16.gmra.mxu0 %v366
      %v412 = vpop.f32.mrf.mxu0
      %v413 = vadd.f32 0.0, %v412
      %v414 = vpop.f32.mrf.mxu0
      %415 = vdwg.mxu0
      %v416 = vadd.f32 %v325, %v387
      %v417 = vadd.f32 %v338, %v400
      %v418 = vadd.f32 %v351, %v413
      %s419 = scalar_lea.vmem %s213, 12
      %v420 = vld [vmem:[%s419] sm:$0xf]
      %421 = vrot.lane.b32.xlu0 %v238, 110
      %v422 = vpop.permute.xlu0 %421
      %423 = vrot.lane.b32.xlu0 %v239, 110
      %v424 = vpop.permute.xlu0 %423
      %425 = vrot.lane.b32.xlu0 %v240, 110
      %v426 = vpop.permute.xlu0 %425
      %vm427 = vcmask 900096
      %v428 = vsel %vm427, %v422, %v424
      %v429 = vsel %vm427, %v424, %v426
      %v431 = vsel %vm250, %v420, 0
      %v434 = vsel %vm254, %v428, 0
      %v437 = vsel %vm254, %v429, 0
      %v440 = vsel %vm254, %v426, 0
      %442 = vmatpush.bf16.msra.mxu0 0
      %443 = vmatpush.bf16.msra.mxu0 0
      %444 = vmatpush.bf16.msra.mxu0 0
      %445 = vmatpush.bf16.msra.mxu0 0
      %446 = vmatpush.bf16.msra.mxu0 0
      %447 = vmatpush.bf16.msra.mxu0 0
      %448 = vmatpush.bf16.msra.mxu0 0
      %449 = vmatpush.bf16.msra.mxu0 %v434
      %450 = vmatmul.bf16.gmra.mxu0 %v431
      %v451 = vpop.f32.mrf.mxu0
      %v452 = vadd.f32 0.0, %v451
      %v453 = vpop.f32.mrf.mxu0
      %454 = vdwg.mxu0
      %455 = vmatpush.bf16.msra.mxu0 0
      %456 = vmatpush.bf16.msra.mxu0 0
      %457 = vmatpush.bf16.msra.mxu0 0
      %458 = vmatpush.bf16.msra.mxu0 0
      %459 = vmatpush.bf16.msra.mxu0 0
      %460 = vmatpush.bf16.msra.mxu0 0
      %461 = vmatpush.bf16.msra.mxu0 0
      %462 = vmatpush.bf16.msra.mxu0 %v437
      %463 = vmatmul.bf16.gmra.mxu0 %v431
      %v464 = vpop.f32.mrf.mxu0
      %v465 = vadd.f32 0.0, %v464
      %v466 = vpop.f32.mrf.mxu0
      %467 = vdwg.mxu0
      %468 = vmatpush.bf16.msra.mxu0 0
      %469 = vmatpush.bf16.msra.mxu0 0
      %470 = vmatpush.bf16.msra.mxu0 0
      %471 = vmatpush.bf16.msra.mxu0 0
      %472 = vmatpush.bf16.msra.mxu0 0
      %473 = vmatpush.bf16.msra.mxu0 0
      %474 = vmatpush.bf16.msra.mxu0 0
      %475 = vmatpush.bf16.msra.mxu0 %v440
      %476 = vmatmul.bf16.gmra.mxu0 %v431
      %v477 = vpop.f32.mrf.mxu0
      %v478 = vadd.f32 0.0, %v477
      %v479 = vpop.f32.mrf.mxu0
      %480 = vdwg.mxu0
      %v481 = vadd.f32 %v416, %v452
      %v482 = vadd.f32 %v417, %v465
      %v483 = vadd.f32 %v418, %v478
      %s484 = scalar_lea.vmem %s213, 16
      %v485 = vld [vmem:[%s484] sm:$0xf]
      %486 = vrot.lane.b32.xlu0 %v238, 109
      %v487 = vpop.permute.xlu0 %486
      %488 = vrot.lane.b32.xlu0 %v239, 109
      %v489 = vpop.permute.xlu0 %488
      %490 = vrot.lane.b32.xlu0 %v240, 109
      %v491 = vpop.permute.xlu0 %490
      %vm492 = vcmask 891904
      %v493 = vsel %vm492, %v487, %v489
      %v494 = vsel %vm492, %v489, %v491
      %v496 = vsel %vm250, %v485, 0
      %v499 = vsel %vm254, %v493, 0
      %v502 = vsel %vm254, %v494, 0
      %v505 = vsel %vm254, %v491, 0
      %507 = vmatpush.bf16.msra.mxu0 0
      %508 = vmatpush.bf16.msra.mxu0 0
      %509 = vmatpush.bf16.msra.mxu0 0
      %510 = vmatpush.bf16.msra.mxu0 0
      %511 = vmatpush.bf16.msra.mxu0 0
      %512 = vmatpush.bf16.msra.mxu0 0
      %513 = vmatpush.bf16.msra.mxu0 0
      %514 = vmatpush.bf16.msra.mxu0 %v499
      %515 = vmatmul.bf16.gmra.mxu0 %v496
      %v516 = vpop.f32.mrf.mxu0
      %v517 = vadd.f32 0.0, %v516
      %v518 = vpop.f32.mrf.mxu0
      %519 = vdwg.mxu0
      %520 = vmatpush.bf16.msra.mxu0 0
      %521 = vmatpush.bf16.msra.mxu0 0
      %522 = vmatpush.bf16.msra.mxu0 0
      %523 = vmatpush.bf16.msra.mxu0 0
      %524 = vmatpush.bf16.msra.mxu0 0
      %525 = vmatpush.bf16.msra.mxu0 0
      %526 = vmatpush.bf16.msra.mxu0 0
      %527 = vmatpush.bf16.msra.mxu0 %v502
      %528 = vmatmul.bf16.gmra.mxu0 %v496
      %v529 = vpop.f32.mrf.mxu0
      %v530 = vadd.f32 0.0, %v529
      %v531 = vpop.f32.mrf.mxu0
      %532 = vdwg.mxu0
      %533 = vmatpush.bf16.msra.mxu0 0
      %534 = vmatpush.bf16.msra.mxu0 0
      %535 = vmatpush.bf16.msra.mxu0 0
      %536 = vmatpush.bf16.msra.mxu0 0
      %537 = vmatpush.bf16.msra.mxu0 0
      %538 = vmatpush.bf16.msra.mxu0 0
      %539 = vmatpush.bf16.msra.mxu0 0
      %540 = vmatpush.bf16.msra.mxu0 %v505
      %541 = vmatmul.bf16.gmra.mxu0 %v496
      %v542 = vpop.f32.mrf.mxu0
      %v543 = vadd.f32 0.0, %v542
      %v544 = vpop.f32.mrf.mxu0
      %545 = vdwg.mxu0
      %v546 = vadd.f32 %v481, %v517
      %v547 = vadd.f32 %v482, %v530
      %v548 = vadd.f32 %v483, %v543
      %s549 = scalar_lea.vmem %s213, 20
      %v550 = vld [vmem:[%s549] sm:$0xf]
      %551 = vrot.lane.b32.xlu0 %v238, 108
      %v552 = vpop.permute.xlu0 %551
      %553 = vrot.lane.b32.xlu0 %v239, 108
      %v554 = vpop.permute.xlu0 %553
      %555 = vrot.lane.b32.xlu0 %v240, 108
      %v556 = vpop.permute.xlu0 %555
      %vm557 = vcmask 883712
      %v558 = vsel %vm557, %v552, %v554
      %v559 = vsel %vm557, %v554, %v556
      %v561 = vsel %vm250, %v550, 0
      %v564 = vsel %vm254, %v558, 0
      %v567 = vsel %vm254, %v559, 0
      %v570 = vsel %vm254, %v556, 0
      %572 = vmatpush.bf16.msra.mxu0 0
      %573 = vmatpush.bf16.msra.mxu0 0
      %574 = vmatpush.bf16.msra.mxu0 0
      %575 = vmatpush.bf16.msra.mxu0 0
      %576 = vmatpush.bf16.msra.mxu0 0
      %577 = vmatpush.bf16.msra.mxu0 0
      %578 = vmatpush.bf16.msra.mxu0 0
      %579 = vmatpush.bf16.msra.mxu0 %v564
      %580 = vmatmul.bf16.gmra.mxu0 %v561
      %v581 = vpop.f32.mrf.mxu0
      %v582 = vadd.f32 0.0, %v581
      %v583 = vpop.f32.mrf.mxu0
      %584 = vdwg.mxu0
      %585 = vmatpush.bf16.msra.mxu0 0
      %586 = vmatpush.bf16.msra.mxu0 0
      %587 = vmatpush.bf16.msra.mxu0 0
      %588 = vmatpush.bf16.msra.mxu0 0
      %589 = vmatpush.bf16.msra.mxu0 0
      %590 = vmatpush.bf16.msra.mxu0 0
      %591 = vmatpush.bf16.msra.mxu0 0
      %592 = vmatpush.bf16.msra.mxu0 %v567
      %593 = vmatmul.bf16.gmra.mxu0 %v561
      %v594 = vpop.f32.mrf.mxu0
      %v595 = vadd.f32 0.0, %v594
      %v596 = vpop.f32.mrf.mxu0
      %597 = vdwg.mxu0
      %598 = vmatpush.bf16.msra.mxu0 0
      %599 = vmatpush.bf16.msra.mxu0 0
      %600 = vmatpush.bf16.msra.mxu0 0
      %601 = vmatpush.bf16.msra.mxu0 0
      %602 = vmatpush.bf16.msra.mxu0 0
      %603 = vmatpush.bf16.msra.mxu0 0
      %604 = vmatpush.bf16.msra.mxu0 0
      %605 = vmatpush.bf16.msra.mxu0 %v570
      %606 = vmatmul.bf16.gmra.mxu0 %v561
      %v607 = vpop.f32.mrf.mxu0
      %v608 = vadd.f32 0.0, %v607
      %v609 = vpop.f32.mrf.mxu0
      %610 = vdwg.mxu0
      %v611 = vadd.f32 %v546, %v582
      %v612 = vadd.f32 %v547, %v595
      %v613 = vadd.f32 %v548, %v608
      %s614 = scalar_lea.vmem %s213, 24
      %v615 = vld [vmem:[%s614] sm:$0xf]
      %616 = vrot.lane.b32.xlu0 %v238, 92
      %v617 = vpop.permute.xlu0 %616
      %618 = vrot.lane.b32.xlu0 %v239, 92
      %v619 = vpop.permute.xlu0 %618
      %620 = vrot.lane.b32.xlu0 %v240, 92
      %v621 = vpop.permute.xlu0 %620
      %vm622 = vcmask 752640
      %v623 = vsel %vm622, %v617, %v619
      %v624 = vsel %vm622, %v619, %v621
      %v626 = vsel %vm250, %v615, 0
      %v629 = vsel %vm254, %v623, 0
      %v632 = vsel %vm254, %v624, 0
      %v635 = vsel %vm254, %v621, 0
      %637 = vmatpush.bf16.msra.mxu0 0
      %638 = vmatpush.bf16.msra.mxu0 0
      %639 = vmatpush.bf16.msra.mxu0 0
      %640 = vmatpush.bf16.msra.mxu0 0
      %641 = vmatpush.bf16.msra.mxu0 0
      %642 = vmatpush.bf16.msra.mxu0 0
      %643 = vmatpush.bf16.msra.mxu0 0
      %644 = vmatpush.bf16.msra.mxu0 %v629
      %645 = vmatmul.bf16.gmra.mxu0 %v626
      %v646 = vpop.f32.mrf.mxu0
      %v647 = vadd.f32 0.0, %v646
      %v648 = vpop.f32.mrf.mxu0
      %649 = vdwg.mxu0
      %650 = vmatpush.bf16.msra.mxu0 0
      %651 = vmatpush.bf16.msra.mxu0 0
      %652 = vmatpush.bf16.msra.mxu0 0
      %653 = vmatpush.bf16.msra.mxu0 0
      %654 = vmatpush.bf16.msra.mxu0 0
      %655 = vmatpush.bf16.msra.mxu0 0
      %656 = vmatpush.bf16.msra.mxu0 0
      %657 = vmatpush.bf16.msra.mxu0 %v632
      %658 = vmatmul.bf16.gmra.mxu0 %v626
      %v659 = vpop.f32.mrf.mxu0
      %v660 = vadd.f32 0.0, %v659
      %v661 = vpop.f32.mrf.mxu0
      %662 = vdwg.mxu0
      %663 = vmatpush.bf16.msra.mxu0 0
      %664 = vmatpush.bf16.msra.mxu0 0
      %665 = vmatpush.bf16.msra.mxu0 0
      %666 = vmatpush.bf16.msra.mxu0 0
      %667 = vmatpush.bf16.msra.mxu0 0
      %668 = vmatpush.bf16.msra.mxu0 0
      %669 = vmatpush.bf16.msra.mxu0 0
      %670 = vmatpush.bf16.msra.mxu0 %v635
      %671 = vmatmul.bf16.gmra.mxu0 %v626
      %v672 = vpop.f32.mrf.mxu0
      %v673 = vadd.f32 0.0, %v672
      %v674 = vpop.f32.mrf.mxu0
      %675 = vdwg.mxu0
      %v676 = vadd.f32 %v611, %v647
      %v677 = vadd.f32 %v612, %v660
      %v678 = vadd.f32 %v613, %v673
      %s679 = scalar_lea.vmem %s213, 28
      %v680 = vld [vmem:[%s679] sm:$0xf]
      %681 = vrot.lane.b32.xlu0 %v238, 91
      %v682 = vpop.permute.xlu0 %681
      %683 = vrot.lane.b32.xlu0 %v239, 91
      %v684 = vpop.permute.xlu0 %683
      %685 = vrot.lane.b32.xlu0 %v240, 91
      %v686 = vpop.permute.xlu0 %685
      %vm687 = vcmask 744448
      %v688 = vsel %vm687, %v682, %v684
      %v689 = vsel %vm687, %v684, %v686
      %v691 = vsel %vm250, %v680, 0
      %v694 = vsel %vm254, %v688, 0
      %v697 = vsel %vm254, %v689, 0
      %v700 = vsel %vm254, %v686, 0
      %702 = vmatpush.bf16.msra.mxu0 0
      %703 = vmatpush.bf16.msra.mxu0 0
      %704 = vmatpush.bf16.msra.mxu0 0
      %705 = vmatpush.bf16.msra.mxu0 0
      %706 = vmatpush.bf16.msra.mxu0 0
      %707 = vmatpush.bf16.msra.mxu0 0
      %708 = vmatpush.bf16.msra.mxu0 0
      %709 = vmatpush.bf16.msra.mxu0 %v694
      %710 = vmatmul.bf16.gmra.mxu0 %v691
      %v711 = vpop.f32.mrf.mxu0
      %v712 = vadd.f32 0.0, %v711
      %v713 = vpop.f32.mrf.mxu0
      %714 = vdwg.mxu0
      %715 = vmatpush.bf16.msra.mxu0 0
      %716 = vmatpush.bf16.msra.mxu0 0
      %717 = vmatpush.bf16.msra.mxu0 0
      %718 = vmatpush.bf16.msra.mxu0 0
      %719 = vmatpush.bf16.msra.mxu0 0
      %720 = vmatpush.bf16.msra.mxu0 0
      %721 = vmatpush.bf16.msra.mxu0 0
      %722 = vmatpush.bf16.msra.mxu0 %v697
      %723 = vmatmul.bf16.gmra.mxu0 %v691
      %v724 = vpop.f32.mrf.mxu0
      %v725 = vadd.f32 0.0, %v724
      %v726 = vpop.f32.mrf.mxu0
      %727 = vdwg.mxu0
      %728 = vmatpush.bf16.msra.mxu0 0
      %729 = vmatpush.bf16.msra.mxu0 0
      %730 = vmatpush.bf16.msra.mxu0 0
      %731 = vmatpush.bf16.msra.mxu0 0
      %732 = vmatpush.bf16.msra.mxu0 0
      %733 = vmatpush.bf16.msra.mxu0 0
      %734 = vmatpush.bf16.msra.mxu0 0
      %735 = vmatpush.bf16.msra.mxu0 %v700
      %736 = vmatmul.bf16.gmra.mxu0 %v691
      %v737 = vpop.f32.mrf.mxu0
      %v738 = vadd.f32 0.0, %v737
      %v739 = vpop.f32.mrf.mxu0
      %740 = vdwg.mxu0
      %v741 = vadd.f32 %v676, %v712
      %v742 = vadd.f32 %v677, %v725
      %v743 = vadd.f32 %v678, %v738
      %s744 = scalar_lea.vmem %s213, 32
      %v745 = vld [vmem:[%s744] sm:$0xf]
      %746 = vrot.lane.b32.xlu0 %v238, 90
      %v747 = vpop.permute.xlu0 %746
      %748 = vrot.lane.b32.xlu0 %v239, 90
      %v749 = vpop.permute.xlu0 %748
      %750 = vrot.lane.b32.xlu0 %v240, 90
      %v751 = vpop.permute.xlu0 %750
      %vm752 = vcmask 736256
      %v753 = vsel %vm752, %v747, %v749
      %v754 = vsel %vm752, %v749, %v751
      %v756 = vsel %vm250, %v745, 0
      %v759 = vsel %vm254, %v753, 0
      %v762 = vsel %vm254, %v754, 0
      %v765 = vsel %vm254, %v751, 0
      %767 = vmatpush.bf16.msra.mxu0 0
      %768 = vmatpush.bf16.msra.mxu0 0
      %769 = vmatpush.bf16.msra.mxu0 0
      %770 = vmatpush.bf16.msra.mxu0 0
      %771 = vmatpush.bf16.msra.mxu0 0
      %772 = vmatpush.bf16.msra.mxu0 0
      %773 = vmatpush.bf16.msra.mxu0 0
      %774 = vmatpush.bf16.msra.mxu0 %v759
      %775 = vmatmul.bf16.gmra.mxu0 %v756
      %v776 = vpop.f32.mrf.mxu0
      %v777 = vadd.f32 0.0, %v776
      %v778 = vpop.f32.mrf.mxu0
      %779 = vdwg.mxu0
      %780 = vmatpush.bf16.msra.mxu0 0
      %781 = vmatpush.bf16.msra.mxu0 0
      %782 = vmatpush.bf16.msra.mxu0 0
      %783 = vmatpush.bf16.msra.mxu0 0
      %784 = vmatpush.bf16.msra.mxu0 0
      %785 = vmatpush.bf16.msra.mxu0 0
      %786 = vmatpush.bf16.msra.mxu0 0
      %787 = vmatpush.bf16.msra.mxu0 %v762
      %788 = vmatmul.bf16.gmra.mxu0 %v756
      %v789 = vpop.f32.mrf.mxu0
      %v790 = vadd.f32 0.0, %v789
      %v791 = vpop.f32.mrf.mxu0
      %792 = vdwg.mxu0
      %793 = vmatpush.bf16.msra.mxu0 0
      %794 = vmatpush.bf16.msra.mxu0 0
      %795 = vmatpush.bf16.msra.mxu0 0
      %796 = vmatpush.bf16.msra.mxu0 0
      %797 = vmatpush.bf16.msra.mxu0 0
      %798 = vmatpush.bf16.msra.mxu0 0
      %799 = vmatpush.bf16.msra.mxu0 0
      %800 = vmatpush.bf16.msra.mxu0 %v765
      %801 = vmatmul.bf16.gmra.mxu0 %v756
      %v802 = vpop.f32.mrf.mxu0
      %v803 = vadd.f32 0.0, %v802
      %v804 = vpop.f32.mrf.mxu0
      %805 = vdwg.mxu0
      %v806 = vadd.f32 %v741, %v777
      %v807 = vadd.f32 %v742, %v790
      %v808 = vadd.f32 %v743, %v803
      %v809 = vld [vmem:[%s217] sm:$0xff]
      %811 = vset.pattern.permute.xlu0 0
      %812 = vperm.xlu0 %811, %v809
      %v813 = vpop.permute.xlu0 %812
      %v815 = vadd.f32 %v806, %v813
      %v816 = vadd.f32 %v807, %v813
      %v817 = vadd.f32 %v808, %v813
      %v818 = vmax.f32 %v815, 0.0
      %v819 = vmax.f32 %v816, 0.0
      %v820 = vmax.f32 %v817, 0.0
      %821 = vst [vmem:[%s226] sm:$0xff] %v818
      %822 = vst [vmem:[%s226 + $0x8] sm:$0xff] %v819
      %vm823 = vcmask 261120
      %824 = vst.msk [vmem:[%s226 + $0x10] sm:$0xff] %vm823, %v820
      %p825 = scmp.lt.s32.totalorder %s18, 1
      %s826 = scalar_select %p825, %s18, 1
      %p827 = scmp.lt.s32.totalorder %s19, 0
      %s828 = scalar_select %p827, %s19, 0
      %s829 = smul.addr %s828, 3
      %s830 = smul.addr %s826, 3
      %s831 = sadd.s32 %s829, %s830
      %s832 = smul.addr %s831, 8
      %s833 = scalar_lea.vmem %s3, %s832
      // Predicated region
      $region33: #{_conv_bn_relu_impl.1} parent=31 // pred_check
        %p834 = pneg %p124
      $region34: #{_conv_bn_relu_impl.1} parent=31 // pred_check_branch
        %836 = sbr.rel (%p834) target = $region36
      $region35: #{_conv_bn_relu_impl.1} parent=31 // pred_region
        _
      $region36: #{_conv_bn_relu_impl.1} parent=31 // pred_fallthru
        _
    $region32: #{_conv_bn_relu_impl.1} parent=5 // pred_fallthru
      _
    %p837 = scmp.le.s32.totalorder 2, %s9
    // Predicated region
    $region37: #{_conv_bn_relu_impl.1} parent=5 // pred_check
      %p838 = pneg %p837
    $region38: #{_conv_bn_relu_impl.1} parent=5 // pred_check_branch
      %840 = sbr.rel (%p838) target = $region40
    $region39: #{_conv_bn_relu_impl.1} parent=5 // pred_region
      %s841 = ssub.s32 %s9, 2
      // Predicated region
      $region41: #{_conv_bn_relu_impl.1} parent=39 // pred_check
        %p842 = pneg %p130
      $region42: #{_conv_bn_relu_impl.1} parent=39 // pred_check_branch
        %844 = sbr.rel (%p842) target = $region44
      $region43: #{_conv_bn_relu_impl.1} parent=39 // pred_region
        %p845 = scmp.lt.s32.totalorder %s20, 1
        %s846 = scalar_select %p845, %s20, 1
        %p847 = scmp.lt.s32.totalorder %s21, 0
        %s848 = scalar_select %p847, %s21, 0
        %s849 = smul.addr %s848, 3
        %s850 = smul.addr %s846, 3
        %s851 = sadd.s32 %s849, %s850
        %s852 = smul.addr %s851, 8
        %s853 = scalar_lea.vmem %s3, %s852
      $region44: #{_conv_bn_relu_impl.1} parent=39 // pred_fallthru
        _
    $region40: #{_conv_bn_relu_impl.1} parent=5 // pred_fallthru
      _
  $region6: #{_conv_bn_relu_impl.1} parent=0 // loop_footer
    %s13 = sadd.s32 1, %s9
  $region7: #{_conv_bn_relu_impl.1} parent=0 // loop_footer_branch
    %8 = sbr.rel target = $region3
  $region8: #{_conv_bn_relu_impl.1} parent=0 // loop_exit
    _

</llo_original>
